<compile_context>
chip_gen: v7x
topology: tpu7x:2x2x1
jax: 0.10.0
libtpu: 0.0.40
codegen_flags: <defaults>
</compile_context>

<pallas_src>
import functools

import jax
import jax.numpy as jnp
from jax.experimental import pallas as pl
from jax.experimental.pallas import tpu as pltpu


# --------------------------------------------------------------------------
# in-kernel helpers
# --------------------------------------------------------------------------
def _layernorm(x, gamma, beta, eps=1e-6):
    # PossFeedForward uses nn.LayerNorm(d_model, eps=1e-06); the same eps is
    # used for the attention LayerNorm.
    mean = jnp.mean(x, axis=-1, keepdims=True)
    var = jnp.mean((x - mean) ** 2, axis=-1, keepdims=True)
    return (x - mean) * jax.lax.rsqrt(var + eps) * gamma + beta


# row indices inside the packed (6, D) row-vector operand
_RV_BO, _RV_AG, _RV_AB, _RV_B2, _RV_FG, _RV_FB = range(6)


# --------------------------------------------------------------------------
# fused DecoderLayer kernel: one batch element per grid step
# --------------------------------------------------------------------------
def decoder_layer_kernel(dec_ref, enc_ref, w_ref, bqkv_ref, rv_ref,
                         w1_ref, b1_ref, w2_ref, o_ref, *, num_heads):
    x = dec_ref[0]            # (S, D) float32
    enc = enc_ref[0]          # (S, D) float32

    wq = w_ref[0]             # (D, D) bf16
    wk = w_ref[1]
    wv = w_ref[2]
    wo = w_ref[3]
    bq = bqkv_ref[0]          # (D, 1) f32
    bk = bqkv_ref[1]
    bv = bqkv_ref[2]
    bo = rv_ref[_RV_BO]       # (D,) f32
    a_gamma = rv_ref[_RV_AG]
    a_beta = rv_ref[_RV_AB]
    b2 = rv_ref[_RV_B2]
    f_gamma = rv_ref[_RV_FG]
    f_beta = rv_ref[_RV_FB]

    def attn(x_q, x_kv):
        S, D = x_q.shape
        dh = D // num_heads
        scale = dh ** -0.5

        xq_b = x_q.astype(jnp.bfloat16)
        xkv_b = x_kv.astype(jnp.bfloat16)

        # Head-major projection: (D_out, S) = W^T @ X^T via dot_general
        # (no materialized transpose); splitting the leading dim into
        # (H, dh) is then a free major-dim reshape.
        def proj_t(xb, w, b):
            y = jax.lax.dot_general(w, xb, (((0,), (1,)), ((), ())),
                                    preferred_element_type=jnp.float32)
            return y + b                      # (D, S), bias broadcasts over S

        qh = proj_t(xq_b, wq, bq).reshape(num_heads, dh, S)    # (H, dh, Sq)
        kh = proj_t(xkv_b, wk, bk).reshape(num_heads, dh, S)   # (H, dh, Sk)
        vh = proj_t(xkv_b, wv, bv).reshape(num_heads, dh, S)   # (H, dh, Sk)

        # All-head scores in a single batched contraction: (H, Sq, Sk)
        s = jnp.einsum('hes,het->hst',
                       qh.astype(jnp.bfloat16), kh.astype(jnp.bfloat16),
                       preferred_element_type=jnp.float32) * scale
        s = s - jnp.max(s, axis=-1, keepdims=True)
        p = jnp.exp(s)
        p = p * pl.reciprocal(jnp.sum(p, axis=-1, keepdims=True), approx=True)

        # All-head context: (H, dh, Sq)
        ctx = jnp.einsum('het,hst->hes',
                         vh.astype(jnp.bfloat16), p.astype(jnp.bfloat16),
                         preferred_element_type=jnp.float32)

        # Single fused output projection: concat(heads) @ Wo  ==  ctx2^T @ Wo
        ctx2 = ctx.reshape(D, S).astype(jnp.bfloat16)           # (D, Sq)
        out = jax.lax.dot_general(ctx2, wo, (((0,), (0,)), ((), ())),
                                  preferred_element_type=jnp.float32) + bo
        out = out + x_q                                         # residual
        return _layernorm(out, a_gamma, a_beta)

    # 1) self-attention; 2) reference re-uses slf_attn for the "cross" step
    y = attn(x, x)
    y = attn(y, enc)

    # 3) position-wise feed-forward: LN(relu(y @ W1 + b1) @ W2 + b2 + y)
    yb = y.astype(jnp.bfloat16)
    h = jnp.dot(yb, w1_ref[...], preferred_element_type=jnp.float32) + b1_ref[0]
    h = jnp.maximum(h, 0.0)
    z = jnp.dot(h.astype(jnp.bfloat16), w2_ref[...],
                preferred_element_type=jnp.float32) + b2
    z = z + y
    o_ref[0] = _layernorm(z, f_gamma, f_beta)


# --------------------------------------------------------------------------
# DecoderLayer forward (single fused pallas_call)
# --------------------------------------------------------------------------
def decoder_layer(decoder_input, encoder_out, params, num_heads, mask=False):
    # TODO(synk): mask=True path not implemented (reference uses mask=False).
    B, S, D = decoder_input.shape
    a = params["slf_attn"]
    f = params["ffn"]
    HID = f["w1"].shape[1]

    # Pack small operands (18 -> 8 pallas_call operands / DMA descriptors).
    # In production these would be stored pre-packed; here the packing is a
    # handful of tiny XLA concats, negligible at these sizes.
    w_stk = jnp.stack([a["wq"], a["wk"], a["wv"], a["wo"]])      # (4, D, D) bf16
    bqkv = jnp.stack([a["bq"], a["bk"], a["bv"]])                # (3, D, 1) f32
    rowv = jnp.concatenate(
        [a["bo"], a["gamma"], a["beta"],
         f["b2"], f["gamma"], f["beta"]], axis=0)                # (6, D) f32

    bsd = pl.BlockSpec((1, S, D), lambda b: (b, 0, 0))

    def full(shape):
        return pl.BlockSpec(shape, lambda b: (0,) * len(shape))

    kernel = functools.partial(decoder_layer_kernel, num_heads=num_heads)
    return pl.pallas_call(
        kernel,
        out_shape=jax.ShapeDtypeStruct((B, S, D), jnp.float32),
        grid=(B,),
        in_specs=[bsd, bsd,
                  full((4, D, D)),     # stacked wq/wk/wv/wo
                  full((3, D, 1)),     # stacked bq/bk/bv (column biases)
                  full((6, D)),        # bo, attn LN g/b, b2, ffn LN g/b
                  full((D, HID)),      # w1
                  full((1, HID)),      # b1
                  full((HID, D))],     # w2
        out_specs=bsd,
        compiler_params=pltpu.CompilerParams(
            dimension_semantics=("parallel",)),
    )(decoder_input, encoder_out, w_stk, bqkv, rowv,
      f["w1"], f["b1"], f["w2"])


# --------------------------------------------------------------------------
# deterministic parameter construction (synthetic weights, no checkpoint)
# weights stored bf16 (MXU-native), biases / LN params f32.
# --------------------------------------------------------------------------
def init_attn_params(key, d_model):
    ks = jax.random.split(key, 4)

    def mk(k):
        return (0.02 * jax.random.normal(k, (d_model, d_model),
                                         jnp.float32)).astype(jnp.bfloat16)

    return {
        "wq": mk(ks[0]), "bq": jnp.zeros((d_model, 1), jnp.float32),
        "wk": mk(ks[1]), "bk": jnp.zeros((d_model, 1), jnp.float32),
        "wv": mk(ks[2]), "bv": jnp.zeros((d_model, 1), jnp.float32),
        "wo": mk(ks[3]), "bo": jnp.zeros((1, d_model), jnp.float32),
        "gamma": jnp.ones((1, d_model), jnp.float32),
        "beta": jnp.zeros((1, d_model), jnp.float32),
    }


def init_ffn_params(key, d_model, d_hidden):
    k1, k2 = jax.random.split(key)
    w1 = (0.02 * jax.random.normal(k1, (d_model, d_hidden),
                                   jnp.float32)).astype(jnp.bfloat16)
    w2 = (0.02 * jax.random.normal(k2, (d_hidden, d_model),
                                   jnp.float32)).astype(jnp.bfloat16)
    return {
        "w1": w1, "b1": jnp.zeros((1, d_hidden), jnp.float32),
        "w2": w2, "b2": jnp.zeros((1, d_model), jnp.float32),
        "gamma": jnp.ones((1, d_model), jnp.float32),
        "beta": jnp.zeros((1, d_model), jnp.float32),
    }


def init_decoder_layer_params(key, d_model, d_hidden):
    k1, k2, k3 = jax.random.split(key, 3)
    return {
        "slf_attn": init_attn_params(k1, d_model),
        # constructed but unused in the reference forward (kept for fidelity)
        "cross_attn": init_attn_params(k2, d_model),
        "ffn": init_ffn_params(k3, d_model, d_hidden),
    }


if __name__ == "__main__":
    B, S, D, HID, HEADS = 2, 8, 32, 64, 4

    key = jax.random.PRNGKey(0)
    k_in, k_enc, k_par = jax.random.split(key, 3)
    decoder_input = jax.random.normal(k_in, (B, S, D), jnp.float32)
    encoder_out = jax.random.normal(k_enc, (B, S, D), jnp.float32)
    params = init_decoder_layer_params(k_par, D, HID)

    out = decoder_layer(decoder_input, encoder_out, params, HEADS, mask=False)
    out = jax.block_until_ready(out)
    assert out.shape == (B, S, D)
    print("KERNEL_OK")
</pallas_src>

<mosaic_0001>
module attributes {stable_mosaic.version = 11 : i64} {
  func.func @decoder_layer_kernel(%arg0: i32, %arg1: memref<1x8x32xf32, #tpu.memory_space<vmem>>, %arg2: memref<1x8x32xf32, #tpu.memory_space<vmem>>, %arg3: memref<4x32x32xbf16, #tpu.memory_space<vmem>>, %arg4: memref<3x32x1xf32, #tpu.memory_space<vmem>>, %arg5: memref<6x32xf32, #tpu.memory_space<vmem>>, %arg6: memref<32x64xbf16, #tpu.memory_space<vmem>>, %arg7: memref<1x64xf32, #tpu.memory_space<vmem>>, %arg8: memref<64x32xbf16, #tpu.memory_space<vmem>>, %arg9: memref<1x8x32xf32, #tpu.memory_space<vmem>>) attributes {dimension_semantics = [#tpu.dimension_semantics<parallel>], iteration_bounds = array<i64: 2>, scalar_prefetch = 0 : i64, scratch_operands = 0 : i64, tpu.core_type = #tpu.core_type<tc>, window_params = [{transform_indices = @transform_0, window_bounds = array<i64: 1, 8, 32>}, {transform_indices = @transform_1, window_bounds = array<i64: 1, 8, 32>}, {pipeline_mode = #tpu.pipeline_mode<synchronous>, transform_indices = @transform_2, window_bounds = array<i64: 4, 32, 32>}, {pipeline_mode = #tpu.pipeline_mode<synchronous>, transform_indices = @transform_3, window_bounds = array<i64: 3, 32, 1>}, {pipeline_mode = #tpu.pipeline_mode<synchronous>, transform_indices = @transform_4, window_bounds = array<i64: 6, 32>}, {pipeline_mode = #tpu.pipeline_mode<synchronous>, transform_indices = @transform_5, window_bounds = array<i64: 32, 64>}, {pipeline_mode = #tpu.pipeline_mode<synchronous>, transform_indices = @transform_6, window_bounds = array<i64: 1, 64>}, {pipeline_mode = #tpu.pipeline_mode<synchronous>, transform_indices = @transform_7, window_bounds = array<i64: 64, 32>}, {transform_indices = @transform_8, window_bounds = array<i64: 1, 8, 32>}]} {
    %c0 = arith.constant 0 : index
    %c0_0 = arith.constant 0 : index
    %c0_1 = arith.constant 0 : index
    %0 = vector.load %arg1[%c0, %c0_0, %c0_1] : memref<1x8x32xf32, #tpu.memory_space<vmem>>, vector<1x8x32xf32>
    %1 = vector.shape_cast %0 : vector<1x8x32xf32> to vector<8x32xf32>
    %c0_2 = arith.constant 0 : index
    %c0_3 = arith.constant 0 : index
    %c0_4 = arith.constant 0 : index
    %2 = vector.load %arg2[%c0_2, %c0_3, %c0_4] : memref<1x8x32xf32, #tpu.memory_space<vmem>>, vector<1x8x32xf32>
    %3 = vector.shape_cast %2 : vector<1x8x32xf32> to vector<8x32xf32>
    %c0_5 = arith.constant 0 : index
    %c0_6 = arith.constant 0 : index
    %c0_7 = arith.constant 0 : index
    %4 = vector.load %arg3[%c0_5, %c0_6, %c0_7] : memref<4x32x32xbf16, #tpu.memory_space<vmem>>, vector<1x32x32xbf16>
    %5 = vector.shape_cast %4 : vector<1x32x32xbf16> to vector<32x32xbf16>
    %c1 = arith.constant 1 : index
    %c0_8 = arith.constant 0 : index
    %c0_9 = arith.constant 0 : index
    %6 = vector.load %arg3[%c1, %c0_8, %c0_9] : memref<4x32x32xbf16, #tpu.memory_space<vmem>>, vector<1x32x32xbf16>
    %7 = vector.shape_cast %6 : vector<1x32x32xbf16> to vector<32x32xbf16>
    %c2 = arith.constant 2 : index
    %c0_10 = arith.constant 0 : index
    %c0_11 = arith.constant 0 : index
    %8 = vector.load %arg3[%c2, %c0_10, %c0_11] : memref<4x32x32xbf16, #tpu.memory_space<vmem>>, vector<1x32x32xbf16>
    %9 = vector.shape_cast %8 : vector<1x32x32xbf16> to vector<32x32xbf16>
    %c3 = arith.constant 3 : index
    %c0_12 = arith.constant 0 : index
    %c0_13 = arith.constant 0 : index
    %10 = vector.load %arg3[%c3, %c0_12, %c0_13] : memref<4x32x32xbf16, #tpu.memory_space<vmem>>, vector<1x32x32xbf16>
    %11 = vector.shape_cast %10 : vector<1x32x32xbf16> to vector<32x32xbf16>
    %c0_14 = arith.constant 0 : index
    %c0_15 = arith.constant 0 : index
    %c0_16 = arith.constant 0 : index
    %12 = vector.load %arg4[%c0_14, %c0_15, %c0_16] : memref<3x32x1xf32, #tpu.memory_space<vmem>>, vector<1x32x1xf32>
    %13 = vector.shape_cast %12 : vector<1x32x1xf32> to vector<32x1xf32>
    %c1_17 = arith.constant 1 : index
    %c0_18 = arith.constant 0 : index
    %c0_19 = arith.constant 0 : index
    %14 = vector.load %arg4[%c1_17, %c0_18, %c0_19] : memref<3x32x1xf32, #tpu.memory_space<vmem>>, vector<1x32x1xf32>
    %15 = vector.shape_cast %14 : vector<1x32x1xf32> to vector<32x1xf32>
    %c2_20 = arith.constant 2 : index
    %c0_21 = arith.constant 0 : index
    %c0_22 = arith.constant 0 : index
    %16 = vector.load %arg4[%c2_20, %c0_21, %c0_22] : memref<3x32x1xf32, #tpu.memory_space<vmem>>, vector<1x32x1xf32>
    %17 = vector.shape_cast %16 : vector<1x32x1xf32> to vector<32x1xf32>
    %c0_23 = arith.constant 0 : index
    %c0_24 = arith.constant 0 : index
    %18 = vector.load %arg5[%c0_23, %c0_24] : memref<6x32xf32, #tpu.memory_space<vmem>>, vector<1x32xf32>
    %19 = vector.shape_cast %18 : vector<1x32xf32> to vector<32xf32>
    %c1_25 = arith.constant 1 : index
    %c0_26 = arith.constant 0 : index
    %20 = vector.load %arg5[%c1_25, %c0_26] : memref<6x32xf32, #tpu.memory_space<vmem>>, vector<1x32xf32>
    %21 = vector.shape_cast %20 : vector<1x32xf32> to vector<32xf32>
    %c2_27 = arith.constant 2 : index
    %c0_28 = arith.constant 0 : index
    %22 = vector.load %arg5[%c2_27, %c0_28] : memref<6x32xf32, #tpu.memory_space<vmem>>, vector<1x32xf32>
    %23 = vector.shape_cast %22 : vector<1x32xf32> to vector<32xf32>
    %c3_29 = arith.constant 3 : index
    %c0_30 = arith.constant 0 : index
    %24 = vector.load %arg5[%c3_29, %c0_30] : memref<6x32xf32, #tpu.memory_space<vmem>>, vector<1x32xf32>
    %25 = vector.shape_cast %24 : vector<1x32xf32> to vector<32xf32>
    %c4 = arith.constant 4 : index
    %c0_31 = arith.constant 0 : index
    %26 = vector.load %arg5[%c4, %c0_31] : memref<6x32xf32, #tpu.memory_space<vmem>>, vector<1x32xf32>
    %27 = vector.shape_cast %26 : vector<1x32xf32> to vector<32xf32>
    %c5 = arith.constant 5 : index
    %c0_32 = arith.constant 0 : index
    %28 = vector.load %arg5[%c5, %c0_32] : memref<6x32xf32, #tpu.memory_space<vmem>>, vector<1x32xf32>
    %29 = vector.shape_cast %28 : vector<1x32xf32> to vector<32xf32>
    %30 = arith.truncf %1 : vector<8x32xf32> to vector<8x32xbf16>
    %31 = arith.truncf %1 : vector<8x32xf32> to vector<8x32xbf16>
    %cst = arith.constant dense<0.000000e+00> : vector<32x8xf32>
    %32 = tpu.matmul %5, %30, %cst {dimension_numbers = #tpu.dot_dimension_numbers<[0], [1], [1], [0], [0, 1, 1, 0], [], []>} : vector<32x32xbf16>, vector<8x32xbf16>, vector<32x8xf32> -> vector<32x8xf32>
    %33 = vector.broadcast %13 : vector<32x1xf32> to vector<32x8xf32>
    %34 = arith.addf %32, %33 : vector<32x8xf32>
    %35 = vector.shape_cast %34 : vector<32x8xf32> to vector<4x8x8xf32>
    %cst_33 = arith.constant dense<0.000000e+00> : vector<32x8xf32>
    %36 = tpu.matmul %7, %31, %cst_33 {dimension_numbers = #tpu.dot_dimension_numbers<[0], [1], [1], [0], [0, 1, 1, 0], [], []>} : vector<32x32xbf16>, vector<8x32xbf16>, vector<32x8xf32> -> vector<32x8xf32>
    %37 = vector.broadcast %15 : vector<32x1xf32> to vector<32x8xf32>
    %38 = arith.addf %36, %37 : vector<32x8xf32>
    %39 = vector.shape_cast %38 : vector<32x8xf32> to vector<4x8x8xf32>
    %cst_34 = arith.constant dense<0.000000e+00> : vector<32x8xf32>
    %40 = tpu.matmul %9, %31, %cst_34 {dimension_numbers = #tpu.dot_dimension_numbers<[0], [1], [1], [0], [0, 1, 1, 0], [], []>} : vector<32x32xbf16>, vector<8x32xbf16>, vector<32x8xf32> -> vector<32x8xf32>
    %41 = vector.broadcast %17 : vector<32x1xf32> to vector<32x8xf32>
    %42 = arith.addf %40, %41 : vector<32x8xf32>
    %43 = vector.shape_cast %42 : vector<32x8xf32> to vector<4x8x8xf32>
    %44 = arith.truncf %35 : vector<4x8x8xf32> to vector<4x8x8xbf16>
    %45 = arith.truncf %39 : vector<4x8x8xf32> to vector<4x8x8xbf16>
    "tpu.trace_start"() <{level = 10 : i32, message = "hes,het->hst"}> : () -> ()
    %cst_35 = arith.constant dense<0.000000e+00> : vector<4x8x8xf32>
    %46 = tpu.matmul %44, %45, %cst_35 {dimension_numbers = #tpu.dot_dimension_numbers<[1], [1], [2], [2], [0, 0, 0, 2, 1, 2], [0], [0]>} : vector<4x8x8xbf16>, vector<4x8x8xbf16>, vector<4x8x8xf32> -> vector<4x8x8xf32>
    "tpu.trace_stop"() : () -> ()
    %cst_36 = arith.constant 0.353553385 : f32
    %47 = vector.broadcast %cst_36 : f32 to vector<4x8x8xf32>
    %48 = arith.mulf %46, %47 : vector<4x8x8xf32>
    %cst_37 = arith.constant dense<0xFF800000> : vector<4x8xf32>
    %49 = vector.multi_reduction <maximumf>, %48, %cst_37 [2] : vector<4x8x8xf32> to vector<4x8xf32>
    %50 = vector.shape_cast %49 : vector<4x8xf32> to vector<4x8x1xf32>
    %51 = vector.broadcast %50 : vector<4x8x1xf32> to vector<4x8x8xf32>
    %52 = arith.subf %48, %51 : vector<4x8x8xf32>
    %53 = math.exp %52 : vector<4x8x8xf32>
    %cst_38 = arith.constant dense<0.000000e+00> : vector<4x8xf32>
    %54 = vector.multi_reduction <add>, %53, %cst_38 [2] : vector<4x8x8xf32> to vector<4x8xf32>
    %55 = vector.shape_cast %54 : vector<4x8xf32> to vector<4x8x1xf32>
    %56 = tpu.reciprocal %55 {approx = true} : vector<4x8x1xf32> -> vector<4x8x1xf32>
    %57 = vector.broadcast %56 : vector<4x8x1xf32> to vector<4x8x8xf32>
    %58 = arith.mulf %53, %57 : vector<4x8x8xf32>
    %59 = arith.truncf %43 : vector<4x8x8xf32> to vector<4x8x8xbf16>
    %60 = arith.truncf %58 : vector<4x8x8xf32> to vector<4x8x8xbf16>
    "tpu.trace_start"() <{level = 10 : i32, message = "het,hst->hes"}> : () -> ()
    %cst_39 = arith.constant dense<0.000000e+00> : vector<4x8x8xf32>
    %61 = tpu.matmul %59, %60, %cst_39 {dimension_numbers = #tpu.dot_dimension_numbers<[2], [2], [1], [1], [0, 0, 0, 1, 1, 1], [0], [0]>} : vector<4x8x8xbf16>, vector<4x8x8xbf16>, vector<4x8x8xf32> -> vector<4x8x8xf32>
    "tpu.trace_stop"() : () -> ()
    %62 = vector.shape_cast %61 : vector<4x8x8xf32> to vector<32x8xf32>
    %63 = arith.truncf %62 : vector<32x8xf32> to vector<32x8xbf16>
    %cst_40 = arith.constant dense<0.000000e+00> : vector<8x32xf32>
    %64 = tpu.matmul %63, %11, %cst_40 {dimension_numbers = #tpu.dot_dimension_numbers<[0], [0], [1], [1], [0, 1, 1, 1], [], []>} : vector<32x8xbf16>, vector<32x32xbf16>, vector<8x32xf32> -> vector<8x32xf32>
    %65 = vector.shape_cast %19 : vector<32xf32> to vector<1x32xf32>
    %66 = vector.broadcast %65 : vector<1x32xf32> to vector<8x32xf32>
    %67 = arith.addf %64, %66 : vector<8x32xf32>
    %68 = arith.addf %67, %1 : vector<8x32xf32>
    %cst_41 = arith.constant dense<0.000000e+00> : vector<8xf32>
    %69 = vector.multi_reduction <add>, %68, %cst_41 [1] : vector<8x32xf32> to vector<8xf32>
    %70 = vector.shape_cast %69 : vector<8xf32> to vector<8x1xf32>
    %cst_42 = arith.constant 3.200000e+01 : f32
    %71 = vector.broadcast %cst_42 : f32 to vector<8x1xf32>
    %72 = arith.divf %70, %71 : vector<8x1xf32>
    %73 = vector.broadcast %72 : vector<8x1xf32> to vector<8x32xf32>
    %74 = arith.subf %68, %73 : vector<8x32xf32>
    %75 = arith.mulf %74, %74 : vector<8x32xf32>
    %cst_43 = arith.constant dense<0.000000e+00> : vector<8xf32>
    %76 = vector.multi_reduction <add>, %75, %cst_43 [1] : vector<8x32xf32> to vector<8xf32>
    %77 = vector.shape_cast %76 : vector<8xf32> to vector<8x1xf32>
    %cst_44 = arith.constant 3.200000e+01 : f32
    %78 = vector.broadcast %cst_44 : f32 to vector<8x1xf32>
    %79 = arith.divf %77, %78 : vector<8x1xf32>
    %80 = vector.broadcast %72 : vector<8x1xf32> to vector<8x32xf32>
    %81 = arith.subf %68, %80 : vector<8x32xf32>
    %cst_45 = arith.constant 9.99999997E-7 : f32
    %82 = vector.broadcast %cst_45 : f32 to vector<8x1xf32>
    %83 = arith.addf %79, %82 : vector<8x1xf32>
    %84 = math.rsqrt %83 : vector<8x1xf32>
    %85 = vector.broadcast %84 : vector<8x1xf32> to vector<8x32xf32>
    %86 = arith.mulf %81, %85 : vector<8x32xf32>
    %87 = vector.shape_cast %21 : vector<32xf32> to vector<1x32xf32>
    %88 = vector.broadcast %87 : vector<1x32xf32> to vector<8x32xf32>
    %89 = arith.mulf %86, %88 : vector<8x32xf32>
    %90 = vector.shape_cast %23 : vector<32xf32> to vector<1x32xf32>
    %91 = vector.broadcast %90 : vector<1x32xf32> to vector<8x32xf32>
    %92 = arith.addf %89, %91 : vector<8x32xf32>
    %93 = arith.truncf %92 : vector<8x32xf32> to vector<8x32xbf16>
    %94 = arith.truncf %3 : vector<8x32xf32> to vector<8x32xbf16>
    %cst_46 = arith.constant dense<0.000000e+00> : vector<32x8xf32>
    %95 = tpu.matmul %5, %93, %cst_46 {dimension_numbers = #tpu.dot_dimension_numbers<[0], [1], [1], [0], [0, 1, 1, 0], [], []>} : vector<32x32xbf16>, vector<8x32xbf16>, vector<32x8xf32> -> vector<32x8xf32>
    %96 = vector.broadcast %13 : vector<32x1xf32> to vector<32x8xf32>
    %97 = arith.addf %95, %96 : vector<32x8xf32>
    %98 = vector.shape_cast %97 : vector<32x8xf32> to vector<4x8x8xf32>
    %cst_47 = arith.constant dense<0.000000e+00> : vector<32x8xf32>
    %99 = tpu.matmul %7, %94, %cst_47 {dimension_numbers = #tpu.dot_dimension_numbers<[0], [1], [1], [0], [0, 1, 1, 0], [], []>} : vector<32x32xbf16>, vector<8x32xbf16>, vector<32x8xf32> -> vector<32x8xf32>
    %100 = vector.broadcast %15 : vector<32x1xf32> to vector<32x8xf32>
    %101 = arith.addf %99, %100 : vector<32x8xf32>
    %102 = vector.shape_cast %101 : vector<32x8xf32> to vector<4x8x8xf32>
    %cst_48 = arith.constant dense<0.000000e+00> : vector<32x8xf32>
    %103 = tpu.matmul %9, %94, %cst_48 {dimension_numbers = #tpu.dot_dimension_numbers<[0], [1], [1], [0], [0, 1, 1, 0], [], []>} : vector<32x32xbf16>, vector<8x32xbf16>, vector<32x8xf32> -> vector<32x8xf32>
    %104 = vector.broadcast %17 : vector<32x1xf32> to vector<32x8xf32>
    %105 = arith.addf %103, %104 : vector<32x8xf32>
    %106 = vector.shape_cast %105 : vector<32x8xf32> to vector<4x8x8xf32>
    %107 = arith.truncf %98 : vector<4x8x8xf32> to vector<4x8x8xbf16>
    %108 = arith.truncf %102 : vector<4x8x8xf32> to vector<4x8x8xbf16>
    "tpu.trace_start"() <{level = 10 : i32, message = "hes,het->hst"}> : () -> ()
    %cst_49 = arith.constant dense<0.000000e+00> : vector<4x8x8xf32>
    %109 = tpu.matmul %107, %108, %cst_49 {dimension_numbers = #tpu.dot_dimension_numbers<[1], [1], [2], [2], [0, 0, 0, 2, 1, 2], [0], [0]>} : vector<4x8x8xbf16>, vector<4x8x8xbf16>, vector<4x8x8xf32> -> vector<4x8x8xf32>
    "tpu.trace_stop"() : () -> ()
    %cst_50 = arith.constant 0.353553385 : f32
    %110 = vector.broadcast %cst_50 : f32 to vector<4x8x8xf32>
    %111 = arith.mulf %109, %110 : vector<4x8x8xf32>
    %cst_51 = arith.constant dense<0xFF800000> : vector<4x8xf32>
    %112 = vector.multi_reduction <maximumf>, %111, %cst_51 [2] : vector<4x8x8xf32> to vector<4x8xf32>
    %113 = vector.shape_cast %112 : vector<4x8xf32> to vector<4x8x1xf32>
    %114 = vector.broadcast %113 : vector<4x8x1xf32> to vector<4x8x8xf32>
    %115 = arith.subf %111, %114 : vector<4x8x8xf32>
    %116 = math.exp %115 : vector<4x8x8xf32>
    %cst_52 = arith.constant dense<0.000000e+00> : vector<4x8xf32>
    %117 = vector.multi_reduction <add>, %116, %cst_52 [2] : vector<4x8x8xf32> to vector<4x8xf32>
    %118 = vector.shape_cast %117 : vector<4x8xf32> to vector<4x8x1xf32>
    %119 = tpu.reciprocal %118 {approx = true} : vector<4x8x1xf32> -> vector<4x8x1xf32>
    %120 = vector.broadcast %119 : vector<4x8x1xf32> to vector<4x8x8xf32>
    %121 = arith.mulf %116, %120 : vector<4x8x8xf32>
    %122 = arith.truncf %106 : vector<4x8x8xf32> to vector<4x8x8xbf16>
    %123 = arith.truncf %121 : vector<4x8x8xf32> to vector<4x8x8xbf16>
    "tpu.trace_start"() <{level = 10 : i32, message = "het,hst->hes"}> : () -> ()
    %cst_53 = arith.constant dense<0.000000e+00> : vector<4x8x8xf32>
    %124 = tpu.matmul %122, %123, %cst_53 {dimension_numbers = #tpu.dot_dimension_numbers<[2], [2], [1], [1], [0, 0, 0, 1, 1, 1], [0], [0]>} : vector<4x8x8xbf16>, vector<4x8x8xbf16>, vector<4x8x8xf32> -> vector<4x8x8xf32>
    "tpu.trace_stop"() : () -> ()
    %125 = vector.shape_cast %124 : vector<4x8x8xf32> to vector<32x8xf32>
    %126 = arith.truncf %125 : vector<32x8xf32> to vector<32x8xbf16>
    %cst_54 = arith.constant dense<0.000000e+00> : vector<8x32xf32>
    %127 = tpu.matmul %126, %11, %cst_54 {dimension_numbers = #tpu.dot_dimension_numbers<[0], [0], [1], [1], [0, 1, 1, 1], [], []>} : vector<32x8xbf16>, vector<32x32xbf16>, vector<8x32xf32> -> vector<8x32xf32>
    %128 = vector.shape_cast %19 : vector<32xf32> to vector<1x32xf32>
    %129 = vector.broadcast %128 : vector<1x32xf32> to vector<8x32xf32>
    %130 = arith.addf %127, %129 : vector<8x32xf32>
    %131 = arith.addf %130, %92 : vector<8x32xf32>
    %cst_55 = arith.constant dense<0.000000e+00> : vector<8xf32>
    %132 = vector.multi_reduction <add>, %131, %cst_55 [1] : vector<8x32xf32> to vector<8xf32>
    %133 = vector.shape_cast %132 : vector<8xf32> to vector<8x1xf32>
    %cst_56 = arith.constant 3.200000e+01 : f32
    %134 = vector.broadcast %cst_56 : f32 to vector<8x1xf32>
    %135 = arith.divf %133, %134 : vector<8x1xf32>
    %136 = vector.broadcast %135 : vector<8x1xf32> to vector<8x32xf32>
    %137 = arith.subf %131, %136 : vector<8x32xf32>
    %138 = arith.mulf %137, %137 : vector<8x32xf32>
    %cst_57 = arith.constant dense<0.000000e+00> : vector<8xf32>
    %139 = vector.multi_reduction <add>, %138, %cst_57 [1] : vector<8x32xf32> to vector<8xf32>
    %140 = vector.shape_cast %139 : vector<8xf32> to vector<8x1xf32>
    %cst_58 = arith.constant 3.200000e+01 : f32
    %141 = vector.broadcast %cst_58 : f32 to vector<8x1xf32>
    %142 = arith.divf %140, %141 : vector<8x1xf32>
    %143 = vector.broadcast %135 : vector<8x1xf32> to vector<8x32xf32>
    %144 = arith.subf %131, %143 : vector<8x32xf32>
    %cst_59 = arith.constant 9.99999997E-7 : f32
    %145 = vector.broadcast %cst_59 : f32 to vector<8x1xf32>
    %146 = arith.addf %142, %145 : vector<8x1xf32>
    %147 = math.rsqrt %146 : vector<8x1xf32>
    %148 = vector.broadcast %147 : vector<8x1xf32> to vector<8x32xf32>
    %149 = arith.mulf %144, %148 : vector<8x32xf32>
    %150 = vector.shape_cast %21 : vector<32xf32> to vector<1x32xf32>
    %151 = vector.broadcast %150 : vector<1x32xf32> to vector<8x32xf32>
    %152 = arith.mulf %149, %151 : vector<8x32xf32>
    %153 = vector.shape_cast %23 : vector<32xf32> to vector<1x32xf32>
    %154 = vector.broadcast %153 : vector<1x32xf32> to vector<8x32xf32>
    %155 = arith.addf %152, %154 : vector<8x32xf32>
    %156 = arith.truncf %155 : vector<8x32xf32> to vector<8x32xbf16>
    %c0_60 = arith.constant 0 : index
    %c0_61 = arith.constant 0 : index
    %157 = vector.load %arg6[%c0_60, %c0_61] : memref<32x64xbf16, #tpu.memory_space<vmem>>, vector<32x64xbf16>
    %cst_62 = arith.constant dense<0.000000e+00> : vector<8x64xf32>
    %158 = tpu.matmul %156, %157, %cst_62 {dimension_numbers = #tpu.dot_dimension_numbers<[1], [0], [0], [1], [0, 0, 1, 1], [], []>} : vector<8x32xbf16>, vector<32x64xbf16>, vector<8x64xf32> -> vector<8x64xf32>
    %c0_63 = arith.constant 0 : index
    %c0_64 = arith.constant 0 : index
    %159 = vector.load %arg7[%c0_63, %c0_64] : memref<1x64xf32, #tpu.memory_space<vmem>>, vector<1x64xf32>
    %160 = vector.shape_cast %159 : vector<1x64xf32> to vector<64xf32>
    %161 = vector.shape_cast %160 : vector<64xf32> to vector<1x64xf32>
    %162 = vector.broadcast %161 : vector<1x64xf32> to vector<8x64xf32>
    %163 = arith.addf %158, %162 : vector<8x64xf32>
    %cst_65 = arith.constant 0.000000e+00 : f32
    %164 = vector.broadcast %cst_65 : f32 to vector<8x64xf32>
    %165 = arith.maximumf %163, %164 : vector<8x64xf32>
    %166 = arith.truncf %165 : vector<8x64xf32> to vector<8x64xbf16>
    %c0_66 = arith.constant 0 : index
    %c0_67 = arith.constant 0 : index
    %167 = vector.load %arg8[%c0_66, %c0_67] : memref<64x32xbf16, #tpu.memory_space<vmem>>, vector<64x32xbf16>
    %cst_68 = arith.constant dense<0.000000e+00> : vector<8x32xf32>
    %168 = tpu.matmul %166, %167, %cst_68 {dimension_numbers = #tpu.dot_dimension_numbers<[1], [0], [0], [1], [0, 0, 1, 1], [], []>} : vector<8x64xbf16>, vector<64x32xbf16>, vector<8x32xf32> -> vector<8x32xf32>
    %169 = vector.shape_cast %25 : vector<32xf32> to vector<1x32xf32>
    %170 = vector.broadcast %169 : vector<1x32xf32> to vector<8x32xf32>
    %171 = arith.addf %168, %170 : vector<8x32xf32>
    %172 = arith.addf %171, %155 : vector<8x32xf32>
    %cst_69 = arith.constant dense<0.000000e+00> : vector<8xf32>
    %173 = vector.multi_reduction <add>, %172, %cst_69 [1] : vector<8x32xf32> to vector<8xf32>
    %174 = vector.shape_cast %173 : vector<8xf32> to vector<8x1xf32>
    %cst_70 = arith.constant 3.200000e+01 : f32
    %175 = vector.broadcast %cst_70 : f32 to vector<8x1xf32>
    %176 = arith.divf %174, %175 : vector<8x1xf32>
    %177 = vector.broadcast %176 : vector<8x1xf32> to vector<8x32xf32>
    %178 = arith.subf %172, %177 : vector<8x32xf32>
    %179 = arith.mulf %178, %178 : vector<8x32xf32>
    %cst_71 = arith.constant dense<0.000000e+00> : vector<8xf32>
    %180 = vector.multi_reduction <add>, %179, %cst_71 [1] : vector<8x32xf32> to vector<8xf32>
    %181 = vector.shape_cast %180 : vector<8xf32> to vector<8x1xf32>
    %cst_72 = arith.constant 3.200000e+01 : f32
    %182 = vector.broadcast %cst_72 : f32 to vector<8x1xf32>
    %183 = arith.divf %181, %182 : vector<8x1xf32>
    %184 = vector.broadcast %176 : vector<8x1xf32> to vector<8x32xf32>
    %185 = arith.subf %172, %184 : vector<8x32xf32>
    %cst_73 = arith.constant 9.99999997E-7 : f32
    %186 = vector.broadcast %cst_73 : f32 to vector<8x1xf32>
    %187 = arith.addf %183, %186 : vector<8x1xf32>
    %188 = math.rsqrt %187 : vector<8x1xf32>
    %189 = vector.broadcast %188 : vector<8x1xf32> to vector<8x32xf32>
    %190 = arith.mulf %185, %189 : vector<8x32xf32>
    %191 = vector.shape_cast %27 : vector<32xf32> to vector<1x32xf32>
    %192 = vector.broadcast %191 : vector<1x32xf32> to vector<8x32xf32>
    %193 = arith.mulf %190, %192 : vector<8x32xf32>
    %194 = vector.shape_cast %29 : vector<32xf32> to vector<1x32xf32>
    %195 = vector.broadcast %194 : vector<1x32xf32> to vector<8x32xf32>
    %196 = arith.addf %193, %195 : vector<8x32xf32>
    %c0_74 = arith.constant 0 : index
    %c0_75 = arith.constant 0 : index
    %c0_76 = arith.constant 0 : index
    %197 = vector.load %arg9[%c0_74, %c0_75, %c0_76] : memref<1x8x32xf32, #tpu.memory_space<vmem>>, vector<1x8x32xf32>
    %198 = vector.shape_cast %197 : vector<1x8x32xf32> to vector<8x32xf32>
    %199 = vector.shape_cast %196 : vector<8x32xf32> to vector<1x8x32xf32>
    tpu.vector_store %arg9[%c0_74, %c0_75, %c0_76], %199 {strides = array<i32>} : memref<1x8x32xf32, #tpu.memory_space<vmem>>, vector<1x8x32xf32>,
    return
  }
  func.func @transform_0(%arg0: i32) -> (i32, i32, i32) {
    %c0_i32 = arith.constant 0 : i32
    %c0_i32_0 = arith.constant 0 : i32
    %c0_i32_1 = arith.constant 0 : i32
    return %arg0, %c0_i32, %c0_i32_0 : i32, i32, i32
  }
  func.func @transform_1(%arg0: i32) -> (i32, i32, i32) {
    %c0_i32 = arith.constant 0 : i32
    %c0_i32_0 = arith.constant 0 : i32
    %c0_i32_1 = arith.constant 0 : i32
    return %arg0, %c0_i32, %c0_i32_0 : i32, i32, i32
  }
  func.func @transform_2(%arg0: i32) -> (i32, i32, i32) {
    %c0_i32 = arith.constant 0 : i32
    %c0_i32_0 = arith.constant 0 : i32
    %c0_i32_1 = arith.constant 0 : i32
    %c0_i32_2 = arith.constant 0 : i32
    return %c0_i32, %c0_i32_0, %c0_i32_1 : i32, i32, i32
  }
  func.func @transform_3(%arg0: i32) -> (i32, i32, i32) {
    %c0_i32 = arith.constant 0 : i32
    %c0_i32_0 = arith.constant 0 : i32
    %c0_i32_1 = arith.constant 0 : i32
    %c0_i32_2 = arith.constant 0 : i32
    return %c0_i32, %c0_i32_0, %c0_i32_1 : i32, i32, i32
  }
  func.func @transform_4(%arg0: i32) -> (i32, i32) {
    %c0_i32 = arith.constant 0 : i32
    %c0_i32_0 = arith.constant 0 : i32
    %c0_i32_1 = arith.constant 0 : i32
    return %c0_i32, %c0_i32_0 : i32, i32
  }
  func.func @transform_5(%arg0: i32) -> (i32, i32) {
    %c0_i32 = arith.constant 0 : i32
    %c0_i32_0 = arith.constant 0 : i32
    %c0_i32_1 = arith.constant 0 : i32
    return %c0_i32, %c0_i32_0 : i32, i32
  }
  func.func @transform_6(%arg0: i32) -> (i32, i32) {
    %c0_i32 = arith.constant 0 : i32
    %c0_i32_0 = arith.constant 0 : i32
    %c0_i32_1 = arith.constant 0 : i32
    return %c0_i32, %c0_i32_0 : i32, i32
  }
  func.func @transform_7(%arg0: i32) -> (i32, i32) {
    %c0_i32 = arith.constant 0 : i32
    %c0_i32_0 = arith.constant 0 : i32
    %c0_i32_1 = arith.constant 0 : i32
    return %c0_i32, %c0_i32_0 : i32, i32
  }
  func.func @transform_8(%arg0: i32) -> (i32, i32, i32) {
    %c0_i32 = arith.constant 0 : i32
    %c0_i32_0 = arith.constant 0 : i32
    %c0_i32_1 = arith.constant 0 : i32
    return %arg0, %c0_i32, %c0_i32_0 : i32, i32, i32
  }
}

</mosaic_0001>

<llo_original>
// kernel: tpu_custom_call.1
$region0: #{tpu_custom_call.1}
  #allocation0 [shape = 'u32[]', space=smem, size = 0x4, offset = 0x4, fixed_abs, tag = 'smem constant byte address 0x4 - core index']
  #allocation1 [shape = 'u32[144,128]{1,0:T(1,128)}', space=vmem, size = 0x12000, scoped, tag = 'internal scratch']
  %s0 = inlined_call_operand.vmem [shape: f32[2,8,32], index: 0, kind: input, shape index: {}]
  %s1 = inlined_call_operand.vmem [shape: f32[2,8,32], index: 1, kind: input, shape index: {}]
  %s2 = inlined_call_operand.vmem [shape: bf16[4,32,32], index: 2, kind: input, shape index: {}]
  %s3 = inlined_call_operand.vmem [shape: f32[3,32,1], index: 3, kind: input, shape index: {}]
  %s4 = inlined_call_operand.vmem [shape: f32[6,32], index: 4, kind: input, shape index: {}]
  %s5 = inlined_call_operand.vmem [shape: bf16[32,64], index: 5, kind: input, shape index: {}]
  %s6 = inlined_call_operand.vmem [shape: f32[1,64], index: 6, kind: input, shape index: {}]
  %s7 = inlined_call_operand.vmem [shape: bf16[64,32], index: 7, kind: input, shape index: {}]
  %s8 = inlined_call_operand.hbm [shape: f32[2,8,32], index: 8, kind: output, shape index: {}]
  %s9 = sld [smem:[#allocation0]]
  $region65: #{tpu_custom_call.1} parent=0
    _
  %s11 = ssub.s32 1, %s9
  %s12 = scalar_select 0, %s11, %s9
  $region1: #{tpu_custom_call.1} parent=0
    #allocation2 [shape = 'u8[8192]{0}', space=vmem, size = 0x2000, scoped, tag = 'output window, operand 0']
    #allocation3 [shape = 's32[2]{0}', space=sflag, size = 0x8, scoped, tag = 'scoped memory for tpu_custom_call.1']
    %13 = vsyncpa [#allocation3], 0
    %s14 = scalar_lea.sflag [#allocation3], 1
    %15 = vsyncpa %s14, 0
    loop: start=0, step=1, limit=4
    $region2: #{tpu_custom_call.1} parent=1 // loop_pre_header
      _
    $region3: #{tpu_custom_call.1} parent=1 // loop_header
      %s17 = sphi 0, %s21
      %p18 = scmp.ge.s32.totalorder %s17, 4
      %s27 = sphi 0, %s29
      %s30 = sphi 0, %s27
      %s31 = sphi 0, %s30
      %s47 = sphi 0, %s31
      %s53 = sphi 0, %s55
      %s56 = sphi 0, %s53
      %s57 = sphi 0, %s56
      %s73 = sphi 0, %s57
      %s77 = sphi 0, %s77
      %s79 = sphi 0, %s77
      %s80 = sphi 0, %s79
      %s94 = sphi 0, %s80
      %s98 = sphi 0, %s98
      %s100 = sphi 0, %s98
      %s101 = sphi 0, %s100
      %s115 = sphi 0, %s101
      %s119 = sphi 0, %s119
      %s121 = sphi 0, %s119
      %s122 = sphi 0, %s121
      %s136 = sphi 0, %s122
      %s140 = sphi 0, %s140
      %s142 = sphi 0, %s140
      %s143 = sphi 0, %s142
      %s157 = sphi 0, %s143
      %s161 = sphi 0, %s161
      %s163 = sphi 0, %s161
      %s164 = sphi 0, %s163
      %s178 = sphi 0, %s164
      %s182 = sphi 0, %s182
      %s184 = sphi 0, %s182
      %s185 = sphi 0, %s184
      %s199 = sphi 0, %s185
      %s205 = sphi 0, %s207
      %s208 = sphi 0, %s205
      %s209 = sphi 0, %s208
      %s225 = sphi 0, %s209
    $region4: #{tpu_custom_call.1} parent=1 // loop_header_branch
      %20 = sbr.rel (%p18) target = $region8
    $region5: #{tpu_custom_call.1} parent=1 // loop_body
      %s22 = ssub.s32 %s17, 1
      %s23 = ssub.s32 %s17, 2
      %s24 = sadd.s32 %s17, 1
      %s25 = ssub.s32 %s17, %s24
      %p26 = scmp.eq.s32.totalorder %s25, 0
      %s28 = sadd.s32 %s27, 1
      %s29 = scalar_select %p26, %s27, %s28
      %p32 = pneg %p26
      %p33 = scmp.eq.s32.totalorder %s17, 1
      %p34 = por %p32, %p33
      %p35 = scmp.ne.s32.totalorder %s27, %s30
      %p36 = scmp.eq.s32.totalorder %s17, 0
      %p37 = por %p35, %p36
      %p38 = scmp.ne.s32.totalorder %s27, %s30
      %p39 = scmp.eq.s32.totalorder %s22, 1
      %p40 = por %p38, %p39
      %p41 = scmp.ne.s32.totalorder %s30, %s31
      %p42 = scmp.eq.s32.totalorder %s22, 0
      %p43 = por %p41, %p42
      %p44 = scmp.ne.s32.totalorder %s30, %s31
      %p45 = scmp.eq.s32.totalorder %s23, 1
      %p46 = por %p44, %p45
      %p48 = scmp.ne.s32.totalorder %s31, %s47
      %p49 = scmp.eq.s32.totalorder %s23, 0
      %p50 = por %p48, %p49
      %s51 = ssub.s32 %s17, %s24
      %p52 = scmp.eq.s32.totalorder %s51, 0
      %s54 = sadd.s32 %s53, 1
      %s55 = scalar_select %p52, %s53, %s54
      %p58 = pneg %p52
      %p59 = scmp.eq.s32.totalorder %s17, 1
      %p60 = por %p58, %p59
      %p61 = scmp.ne.s32.totalorder %s53, %s56
      %p62 = scmp.eq.s32.totalorder %s17, 0
      %p63 = por %p61, %p62
      %p64 = scmp.ne.s32.totalorder %s53, %s56
      %p65 = scmp.eq.s32.totalorder %s22, 1
      %p66 = por %p64, %p65
      %p67 = scmp.ne.s32.totalorder %s56, %s57
      %p68 = scmp.eq.s32.totalorder %s22, 0
      %p69 = por %p67, %p68
      %p70 = scmp.ne.s32.totalorder %s56, %s57
      %p71 = scmp.eq.s32.totalorder %s23, 1
      %p72 = por %p70, %p71
      %p74 = scmp.ne.s32.totalorder %s57, %s73
      %p75 = scmp.eq.s32.totalorder %s23, 0
      %p76 = por %p74, %p75
      %s78 = sadd.s32 %s77, 1
      %p81 = scmp.eq.s32.totalorder %s17, 1
      %p82 = scmp.ne.s32.totalorder %s77, %s79
      %p83 = scmp.eq.s32.totalorder %s17, 0
      %p84 = por %p82, %p83
      %p85 = scmp.ne.s32.totalorder %s77, %s79
      %p86 = scmp.eq.s32.totalorder %s22, 1
      %p87 = por %p85, %p86
      %p88 = scmp.ne.s32.totalorder %s79, %s80
      %p89 = scmp.eq.s32.totalorder %s22, 0
      %p90 = por %p88, %p89
      %p91 = scmp.ne.s32.totalorder %s79, %s80
      %p92 = scmp.eq.s32.totalorder %s23, 1
      %p93 = por %p91, %p92
      %p95 = scmp.ne.s32.totalorder %s80, %s94
      %p96 = scmp.eq.s32.totalorder %s23, 0
      %p97 = por %p95, %p96
      %s99 = sadd.s32 %s98, 1
      %p102 = scmp.eq.s32.totalorder %s17, 1
      %p103 = scmp.ne.s32.totalorder %s98, %s100
      %p104 = scmp.eq.s32.totalorder %s17, 0
      %p105 = por %p103, %p104
      %p106 = scmp.ne.s32.totalorder %s98, %s100
      %p107 = scmp.eq.s32.totalorder %s22, 1
      %p108 = por %p106, %p107
      %p109 = scmp.ne.s32.totalorder %s100, %s101
      %p110 = scmp.eq.s32.totalorder %s22, 0
      %p111 = por %p109, %p110
      %p112 = scmp.ne.s32.totalorder %s100, %s101
      %p113 = scmp.eq.s32.totalorder %s23, 1
      %p114 = por %p112, %p113
      %p116 = scmp.ne.s32.totalorder %s101, %s115
      %p117 = scmp.eq.s32.totalorder %s23, 0
      %p118 = por %p116, %p117
      %s120 = sadd.s32 %s119, 1
      %p123 = scmp.eq.s32.totalorder %s17, 1
      %p124 = scmp.ne.s32.totalorder %s119, %s121
      %p125 = scmp.eq.s32.totalorder %s17, 0
      %p126 = por %p124, %p125
      %p127 = scmp.ne.s32.totalorder %s119, %s121
      %p128 = scmp.eq.s32.totalorder %s22, 1
      %p129 = por %p127, %p128
      %p130 = scmp.ne.s32.totalorder %s121, %s122
      %p131 = scmp.eq.s32.totalorder %s22, 0
      %p132 = por %p130, %p131
      %p133 = scmp.ne.s32.totalorder %s121, %s122
      %p134 = scmp.eq.s32.totalorder %s23, 1
      %p135 = por %p133, %p134
      %p137 = scmp.ne.s32.totalorder %s122, %s136
      %p138 = scmp.eq.s32.totalorder %s23, 0
      %p139 = por %p137, %p138
      %s141 = sadd.s32 %s140, 1
      %p144 = scmp.eq.s32.totalorder %s17, 1
      %p145 = scmp.ne.s32.totalorder %s140, %s142
      %p146 = scmp.eq.s32.totalorder %s17, 0
      %p147 = por %p145, %p146
      %p148 = scmp.ne.s32.totalorder %s140, %s142
      %p149 = scmp.eq.s32.totalorder %s22, 1
      %p150 = por %p148, %p149
      %p151 = scmp.ne.s32.totalorder %s142, %s143
      %p152 = scmp.eq.s32.totalorder %s22, 0
      %p153 = por %p151, %p152
      %p154 = scmp.ne.s32.totalorder %s142, %s143
      %p155 = scmp.eq.s32.totalorder %s23, 1
      %p156 = por %p154, %p155
      %p158 = scmp.ne.s32.totalorder %s143, %s157
      %p159 = scmp.eq.s32.totalorder %s23, 0
      %p160 = por %p158, %p159
      %s162 = sadd.s32 %s161, 1
      %p165 = scmp.eq.s32.totalorder %s17, 1
      %p166 = scmp.ne.s32.totalorder %s161, %s163
      %p167 = scmp.eq.s32.totalorder %s17, 0
      %p168 = por %p166, %p167
      %p169 = scmp.ne.s32.totalorder %s161, %s163
      %p170 = scmp.eq.s32.totalorder %s22, 1
      %p171 = por %p169, %p170
      %p172 = scmp.ne.s32.totalorder %s163, %s164
      %p173 = scmp.eq.s32.totalorder %s22, 0
      %p174 = por %p172, %p173
      %p175 = scmp.ne.s32.totalorder %s163, %s164
      %p176 = scmp.eq.s32.totalorder %s23, 1
      %p177 = por %p175, %p176
      %p179 = scmp.ne.s32.totalorder %s164, %s178
      %p180 = scmp.eq.s32.totalorder %s23, 0
      %p181 = por %p179, %p180
      %s183 = sadd.s32 %s182, 1
      %p186 = scmp.eq.s32.totalorder %s17, 1
      %p187 = scmp.ne.s32.totalorder %s182, %s184
      %p188 = scmp.eq.s32.totalorder %s17, 0
      %p189 = por %p187, %p188
      %p190 = scmp.ne.s32.totalorder %s182, %s184
      %p191 = scmp.eq.s32.totalorder %s22, 1
      %p192 = por %p190, %p191
      %p193 = scmp.ne.s32.totalorder %s184, %s185
      %p194 = scmp.eq.s32.totalorder %s22, 0
      %p195 = por %p193, %p194
      %p196 = scmp.ne.s32.totalorder %s184, %s185
      %p197 = scmp.eq.s32.totalorder %s23, 1
      %p198 = por %p196, %p197
      %p200 = scmp.ne.s32.totalorder %s185, %s199
      %p201 = scmp.eq.s32.totalorder %s23, 0
      %p202 = por %p200, %p201
      %s203 = ssub.s32 %s17, %s24
      %p204 = scmp.eq.s32.totalorder %s203, 0
      %s206 = sadd.s32 %s205, 1
      %s207 = scalar_select %p204, %s205, %s206
      %p210 = pneg %p204
      %p211 = scmp.eq.s32.totalorder %s17, 1
      %p212 = por %p210, %p211
      %p213 = scmp.ne.s32.totalorder %s205, %s208
      %p214 = scmp.eq.s32.totalorder %s17, 0
      %p215 = por %p213, %p214
      %p216 = scmp.ne.s32.totalorder %s205, %s208
      %p217 = scmp.eq.s32.totalorder %s22, 1
      %p218 = por %p216, %p217
      %p219 = scmp.ne.s32.totalorder %s208, %s209
      %p220 = scmp.eq.s32.totalorder %s22, 0
      %p221 = por %p219, %p220
      %p222 = scmp.ne.s32.totalorder %s208, %s209
      %p223 = scmp.eq.s32.totalorder %s23, 1
      %p224 = por %p222, %p223
      %p226 = scmp.ne.s32.totalorder %s209, %s225
      %p227 = scmp.eq.s32.totalorder %s23, 0
      %p228 = por %p226, %p227
      %p229 = scmp.le.s32.totalorder 1, %s17
      %p230 = scmp.lt.s32.totalorder %s17, 3
      %p231 = pnand %p229, %p230
      %p232 = pneg %p231
      // Predicated region
      $region9: #{tpu_custom_call.1} parent=5 // pred_check
        _
      $region10: #{tpu_custom_call.1} parent=5 // pred_check_branch
        %234 = sbr.rel (%p231) target = $region12
      $region11: #{tpu_custom_call.1} parent=5 // pred_region
        %s235 = ssub.s32 %s17, 1
        // Predicated region
        $region13: #{tpu_custom_call.1} parent=11 // pred_check
          %p236 = pneg %p90
        $region14: #{tpu_custom_call.1} parent=11 // pred_check_branch
          %238 = sbr.rel (%p236) target = $region16
        $region15: #{tpu_custom_call.1} parent=11 // pred_region
          _
        $region16: #{tpu_custom_call.1} parent=11 // pred_fallthru
          _
        // Predicated region
        $region17: #{tpu_custom_call.1} parent=11 // pred_check
          %p239 = pneg %p111
        $region18: #{tpu_custom_call.1} parent=11 // pred_check_branch
          %241 = sbr.rel (%p239) target = $region20
        $region19: #{tpu_custom_call.1} parent=11 // pred_region
          _
        $region20: #{tpu_custom_call.1} parent=11 // pred_fallthru
          _
        // Predicated region
        $region21: #{tpu_custom_call.1} parent=11 // pred_check
          %p242 = pneg %p132
        $region22: #{tpu_custom_call.1} parent=11 // pred_check_branch
          %244 = sbr.rel (%p242) target = $region24
        $region23: #{tpu_custom_call.1} parent=11 // pred_region
          _
        $region24: #{tpu_custom_call.1} parent=11 // pred_fallthru
          _
        // Predicated region
        $region25: #{tpu_custom_call.1} parent=11 // pred_check
          %p245 = pneg %p153
        $region26: #{tpu_custom_call.1} parent=11 // pred_check_branch
          %247 = sbr.rel (%p245) target = $region28
        $region27: #{tpu_custom_call.1} parent=11 // pred_region
          _
        $region28: #{tpu_custom_call.1} parent=11 // pred_fallthru
          _
        // Predicated region
        $region29: #{tpu_custom_call.1} parent=11 // pred_check
          %p248 = pneg %p174
        $region30: #{tpu_custom_call.1} parent=11 // pred_check_branch
          %250 = sbr.rel (%p248) target = $region32
        $region31: #{tpu_custom_call.1} parent=11 // pred_region
          _
        $region32: #{tpu_custom_call.1} parent=11 // pred_fallthru
          _
        // Predicated region
        $region33: #{tpu_custom_call.1} parent=11 // pred_check
          %p251 = pneg %p195
        $region34: #{tpu_custom_call.1} parent=11 // pred_check_branch
          %253 = sbr.rel (%p251) target = $region36
        $region35: #{tpu_custom_call.1} parent=11 // pred_region
          _
        $region36: #{tpu_custom_call.1} parent=11 // pred_fallthru
          _
      $region12: #{tpu_custom_call.1} parent=5 // pred_fallthru
        _
      %p254 = scmp.lt.s32.totalorder %s17, 2
      // Predicated region
      $region37: #{tpu_custom_call.1} parent=5 // pred_check
        %p255 = pneg %p254
      $region38: #{tpu_custom_call.1} parent=5 // pred_check_branch
        %257 = sbr.rel (%p255) target = $region40
      $region39: #{tpu_custom_call.1} parent=5 // pred_region
        // Predicated region
        $region41: #{tpu_custom_call.1} parent=39 // pred_check
          %p258 = pneg %p37
        $region42: #{tpu_custom_call.1} parent=39 // pred_check_branch
          %260 = sbr.rel (%p258) target = $region44
        $region43: #{tpu_custom_call.1} parent=39 // pred_region
          %p261 = scmp.lt.s32.totalorder %s17, 1
          %s262 = scalar_select %p261, %s17, 1
          %s263 = smul.addr %s262, 8
          %s264 = scalar_lea.vmem %s0, %s263
        $region44: #{tpu_custom_call.1} parent=39 // pred_fallthru
          _
        // Predicated region
        $region45: #{tpu_custom_call.1} parent=39 // pred_check
          %p265 = pneg %p63
        $region46: #{tpu_custom_call.1} parent=39 // pred_check_branch
          %267 = sbr.rel (%p265) target = $region48
        $region47: #{tpu_custom_call.1} parent=39 // pred_region
          %p268 = scmp.lt.s32.totalorder %s17, 1
          %s269 = scalar_select %p268, %s17, 1
          %s270 = smul.addr %s269, 8
          %s271 = scalar_lea.vmem %s1, %s270
        $region48: #{tpu_custom_call.1} parent=39 // pred_fallthru
          _
      $region40: #{tpu_custom_call.1} parent=5 // pred_fallthru
        _
      %p272 = scmp.le.s32.totalorder 1, %s17
      %p273 = scmp.lt.s32.totalorder %s17, 3
      %p274 = pnand %p272, %p273
      %p275 = pneg %p274
      // Predicated region
      $region49: #{tpu_custom_call.1} parent=5 // pred_check
        _
      $region50: #{tpu_custom_call.1} parent=5 // pred_check_branch
        %277 = sbr.rel (%p274) target = $region52
      $region51: #{tpu_custom_call.1} parent=5 // pred_region
        %s278 = ssub.s32 %s17, 1
        %p279 = scmp.lt.s32.totalorder %s22, 1
        %s280 = scalar_select %p279, %s22, 1
        %s281 = smul.addr %s280, 8
        %s282 = scalar_lea.vmem %s0, %s281
        %p283 = pneg %p43
        %p284 = pneg %p40
        %p285 = scmp.lt.s32.totalorder %s22, 1
        %s286 = scalar_select %p285, %s22, 1
        %s287 = smul.addr %s286, 8
        %s288 = scalar_lea.vmem %s1, %s287
        %p289 = pneg %p69
        %p290 = pneg %p66
        %p291 = pneg %p90
        %p292 = pneg %p87
        %p293 = pneg %p111
        %p294 = pneg %p108
        %p295 = pneg %p132
        %p296 = pneg %p129
        %p297 = pneg %p153
        %p298 = pneg %p150
        %p299 = pneg %p174
        %p300 = pneg %p171
        %p301 = pneg %p195
        %p302 = pneg %p192
        %p303 = pneg %p221
        %p304 = pneg %p218
        %s305 = sand.u32 %s208, 1
        %s306 = scalar_lea.sflag [#allocation3], %s305
        %s307 = sand.u32 %s208, 1
        %s308 = smul.addr %s307, 8
        %s309 = scalar_lea.vmem [#allocation2], %s308
        %p310 = scmp.lt.s32.totalorder %s22, 1
        %s311 = scalar_select %p310, %s22, 1
        %s312 = smul.addr %s311, 8
        %s313 = scalar_lea.vmem %s0, %s312
        %p314 = scmp.lt.s32.totalorder %s22, 1
        %s315 = scalar_select %p314, %s22, 1
        %s316 = smul.addr %s315, 8
        %s317 = scalar_lea.vmem %s1, %s316
        %v319 = vld [vmem:[%s313] sm:$0xff]
        %v320 = vld [vmem:[%s317] sm:$0xff]
        %v321 = vld [vmem:[%s2] sm:$0xf]
        %v322 = vld [vmem:[%s2 + $0x4] sm:$0xf]
        %v323 = vld [vmem:[%s2 + $0x8] sm:$0xf]
        %v324 = vld [vmem:[%s2 + $0xc] sm:$0xf]
        %s325 = scalar_lea.vmem %s2, 16
        %v326 = vld [vmem:[%s325] sm:$0xf]
        %v327 = vld [vmem:[%s325 + $0x4] sm:$0xf]
        %v328 = vld [vmem:[%s325 + $0x8] sm:$0xf]
        %v329 = vld [vmem:[%s325 + $0xc] sm:$0xf]
        %s330 = scalar_lea.vmem %s2, 32
        %v331 = vld [vmem:[%s330] sm:$0xf]
        %v332 = vld [vmem:[%s330 + $0x4] sm:$0xf]
        %v333 = vld [vmem:[%s330 + $0x8] sm:$0xf]
        %v334 = vld [vmem:[%s330 + $0xc] sm:$0xf]
        %s335 = scalar_lea.vmem %s2, 48
        %v336 = vld [vmem:[%s335] sm:$0xf]
        %v337 = vld [vmem:[%s335 + $0x4] sm:$0xf]
        %v338 = vld [vmem:[%s335 + $0x8] sm:$0xf]
        %v339 = vld [vmem:[%s335 + $0xc] sm:$0xf]
        %v340 = vld [vmem:[%s3] sm:$0xff]
        %v341 = vld [vmem:[%s3 + $0x8] sm:$0xff]
        %v342 = vld [vmem:[%s3 + $0x10] sm:$0xff]
        %v343 = vld [vmem:[%s3 + $0x18] sm:$0xff]
        %s344 = scalar_lea.vmem %s3, 32
        %v345 = vld [vmem:[%s344] sm:$0xff]
        %v346 = vld [vmem:[%s344 + $0x8] sm:$0xff]
        %v347 = vld [vmem:[%s344 + $0x10] sm:$0xff]
        %v348 = vld [vmem:[%s344 + $0x18] sm:$0xff]
        %s349 = scalar_lea.vmem %s3, 64
        %v350 = vld [vmem:[%s349] sm:$0xff]
        %v351 = vld [vmem:[%s349 + $0x8] sm:$0xff]
        %v352 = vld [vmem:[%s349 + $0x10] sm:$0xff]
        %v353 = vld [vmem:[%s349 + $0x18] sm:$0xff]
        %v354 = vld [vmem:[%s4] sm:$0x1]
        %v355 = vld [vmem:[%s4 + $0x1] sm:$0x1]
        %v356 = vld [vmem:[%s4 + $0x2] sm:$0x1]
        %v357 = vld [vmem:[%s4 + $0x3] sm:$0x1]
        %v358 = vld [vmem:[%s4 + $0x4] sm:$0x1]
        %v359 = vld [vmem:[%s4 + $0x5] sm:$0x1]
        %v360 = vpack.c.bf16 %v319, %v319
        %362 = vset.pattern.permute.xlu0 0
        %363 = vperm.xlu0 %362, %v340
        %v364 = vpop.permute.xlu0 %363
        %367 = vset.pattern.permute.xlu0 0
        %368 = vperm.xlu0 %367, %v341
        %v369 = vpop.permute.xlu0 %368
        %372 = vset.pattern.permute.xlu0 0
        %373 = vperm.xlu0 %372, %v342
        %v374 = vpop.permute.xlu0 %373
        %377 = vset.pattern.permute.xlu0 0
        %378 = vperm.xlu0 %377, %v343
        %v379 = vpop.permute.xlu0 %378
        %v385 = vunpack.c.l.b16 %v321
        %v386 = vunpack.c.l.b16 %v322
        %v387 = vunpack.c.l.b16 %v323
        %v388 = vunpack.c.l.b16 %v324
        %v389 = vpack.c.b16 %v386, %v385
        %v390 = vpack.c.b16 %v388, %v387
        %393 = vxpose.xlu0.c.b16.start [1/8] %v389, 128
        %394 = vxpose.xlu0.c.b16.cont [2/8] %v390, 128
        %395 = vxpose.xlu0.c.b16.cont [3/8] 0, 128
        %396 = vxpose.xlu0.c.b16.cont [4/8] 0, 128
        %397 = vxpose.xlu0.c.b16.cont [5/8] 0, 128
        %398 = vxpose.xlu0.c.b16.cont [6/8] 0, 128
        %399 = vxpose.xlu0.c.b16.cont [7/8] 0, 128
        %400 = vxpose.xlu0.c.b16.end [8/8] 0, 128
        %v401 = vpop.trf.xlu0
        %v402 = vpop.trf.xlu0
        %v403 = vpop.trf.xlu0
        %v404 = vpop.trf.xlu0
        %v405 = vpop.trf.xlu0
        %v406 = vpop.trf.xlu0
        %v407 = vpop.trf.xlu0
        %v408 = vpop.trf.xlu0
        %vm409 = vcmask 261120
        %v411 = vsel %vm409, %v401, 0
        %v414 = vsel %vm409, %v402, 0
        %v417 = vsel %vm409, %v360, 0
        %419 = vmatprep.subr.bf16.mxu0 0
        %420 = vmatpush1.bf16.xpose.msra.mxu0 %v417
        %421 = vmatprep.subr.bf16.mxu0 0
        %422 = vmatpush1.bf16.xpose.msra.mxu0 0
        %423 = vmatprep.subr.bf16.mxu0 0
        %424 = vmatpush1.bf16.xpose.msra.mxu0 0
        %425 = vmatprep.subr.bf16.mxu0 0
        %426 = vmatpush1.bf16.xpose.msra.mxu0 0
        %427 = vmatprep.subr.bf16.mxu0 0
        %428 = vmatpush1.bf16.xpose.msra.mxu0 0
        %429 = vmatprep.subr.bf16.mxu0 0
        %430 = vmatpush1.bf16.xpose.msra.mxu0 0
        %431 = vmatprep.subr.bf16.mxu0 0
        %432 = vmatpush1.bf16.xpose.msra.mxu0 0
        %433 = vmatprep.subr.bf16.mxu0 0
        %434 = vmatpush1.bf16.xpose.msra.mxu0 0
        %435 = vmatprep.subr.bf16.mxu0 0
        %436 = vmatpush1.bf16.xpose.msra.mxu0 0
        %437 = vmatprep.subr.bf16.mxu0 0
        %438 = vmatpush1.bf16.xpose.msra.mxu0 0
        %439 = vmatprep.subr.bf16.mxu0 0
        %440 = vmatpush1.bf16.xpose.msra.mxu0 0
        %441 = vmatprep.subr.bf16.mxu0 0
        %442 = vmatpush1.bf16.xpose.msra.mxu0 0
        %443 = vmatprep.subr.bf16.mxu0 0
        %444 = vmatpush1.bf16.xpose.msra.mxu0 0
        %445 = vmatprep.subr.bf16.mxu0 0
        %446 = vmatpush1.bf16.xpose.msra.mxu0 0
        %447 = vmatprep.subr.bf16.mxu0 0
        %448 = vmatpush1.bf16.xpose.msra.mxu0 0
        %449 = vmatprep.subr.bf16.mxu0 0
        %450 = vmatpush1.bf16.xpose.msra.mxu0 0
        %451 = vmatprep.mubr.bf16.mxu0 0
        %452 = vmatmul.mubr.bf16.gmra.mrb[0].mxu0 %v411
        %v453 = vpop.f32.mrb[0].mxu0
        %v454 = vadd.f32 %v364, %v453
        %v455 = vpop.f32.mrb[0].mxu0
        %v456 = vpop.f32.mrb[0].mxu0
        %v457 = vadd.f32 %v369, %v456
        %v458 = vpop.f32.mrb[0].mxu0
        %459 = vmatprep.mubr.bf16.mxu0 0
        %460 = vmatmul.mubr.bf16.gmra.mrb[0].mxu0 %v414
        %v461 = vpop.f32.mrb[0].mxu0
        %v462 = vadd.f32 %v374, %v461
        %v463 = vpop.f32.mrb[0].mxu0
        %v464 = vpop.f32.mrb[0].mxu0
        %v465 = vadd.f32 %v379, %v464
        %v466 = vpop.f32.mrb[0].mxu0
        %467 = vdwg.mxu0
        %469 = vset.pattern.permute.xlu0 0
        %470 = vperm.xlu0 %469, %v345
        %v471 = vpop.permute.xlu0 %470
        %474 = vset.pattern.permute.xlu0 0
        %475 = vperm.xlu0 %474, %v346
        %v476 = vpop.permute.xlu0 %475
        %479 = vset.pattern.permute.xlu0 0
        %480 = vperm.xlu0 %479, %v347
        %v481 = vpop.permute.xlu0 %480
        %484 = vset.pattern.permute.xlu0 0
        %485 = vperm.xlu0 %484, %v348
        %v486 = vpop.permute.xlu0 %485
        %v492 = vunpack.c.l.b16 %v326
        %v493 = vunpack.c.l.b16 %v327
        %v494 = vunpack.c.l.b16 %v328
        %v495 = vunpack.c.l.b16 %v329
        %v496 = vpack.c.b16 %v493, %v492
        %v497 = vpack.c.b16 %v495, %v494
        %500 = vxpose.xlu0.c.b16.start [1/8] %v496, 128
        %501 = vxpose.xlu0.c.b16.cont [2/8] %v497, 128
        %502 = vxpose.xlu0.c.b16.cont [3/8] 0, 128
        %503 = vxpose.xlu0.c.b16.cont [4/8] 0, 128
        %504 = vxpose.xlu0.c.b16.cont [5/8] 0, 128
        %505 = vxpose.xlu0.c.b16.cont [6/8] 0, 128
        %506 = vxpose.xlu0.c.b16.cont [7/8] 0, 128
        %507 = vxpose.xlu0.c.b16.end [8/8] 0, 128
        %v508 = vpop.trf.xlu0
        %v509 = vpop.trf.xlu0
        %v510 = vpop.trf.xlu0
        %v511 = vpop.trf.xlu0
        %v512 = vpop.trf.xlu0
        %v513 = vpop.trf.xlu0
        %v514 = vpop.trf.xlu0
        %v515 = vpop.trf.xlu0
        %v517 = vsel %vm409, %v508, 0
        %v520 = vsel %vm409, %v509, 0
        %522 = vmatprep.subr.bf16.mxu0 0
        %523 = vmatpush1.bf16.xpose.msra.mxu0 %v417
        %524 = vmatprep.subr.bf16.mxu0 0
        %525 = vmatpush1.bf16.xpose.msra.mxu0 0
        %526 = vmatprep.subr.bf16.mxu0 0
        %527 = vmatpush1.bf16.xpose.msra.mxu0 0
        %528 = vmatprep.subr.bf16.mxu0 0
        %529 = vmatpush1.bf16.xpose.msra.mxu0 0
        %530 = vmatprep.subr.bf16.mxu0 0
        %531 = vmatpush1.bf16.xpose.msra.mxu0 0
        %532 = vmatprep.subr.bf16.mxu0 0
        %533 = vmatpush1.bf16.xpose.msra.mxu0 0
        %534 = vmatprep.subr.bf16.mxu0 0
        %535 = vmatpush1.bf16.xpose.msra.mxu0 0
        %536 = vmatprep.subr.bf16.mxu0 0
        %537 = vmatpush1.bf16.xpose.msra.mxu0 0
        %538 = vmatprep.subr.bf16.mxu0 0
        %539 = vmatpush1.bf16.xpose.msra.mxu0 0
        %540 = vmatprep.subr.bf16.mxu0 0
        %541 = vmatpush1.bf16.xpose.msra.mxu0 0
        %542 = vmatprep.subr.bf16.mxu0 0
        %543 = vmatpush1.bf16.xpose.msra.mxu0 0
        %544 = vmatprep.subr.bf16.mxu0 0
        %545 = vmatpush1.bf16.xpose.msra.mxu0 0
        %546 = vmatprep.subr.bf16.mxu0 0
        %547 = vmatpush1.bf16.xpose.msra.mxu0 0
        %548 = vmatprep.subr.bf16.mxu0 0
        %549 = vmatpush1.bf16.xpose.msra.mxu0 0
        %550 = vmatprep.subr.bf16.mxu0 0
        %551 = vmatpush1.bf16.xpose.msra.mxu0 0
        %552 = vmatprep.subr.bf16.mxu0 0
        %553 = vmatpush1.bf16.xpose.msra.mxu0 0
        %554 = vmatprep.mubr.bf16.mxu0 0
        %555 = vmatmul.mubr.bf16.gmra.mrb[0].mxu0 %v517
        %v556 = vpop.f32.mrb[0].mxu0
        %v557 = vadd.f32 %v471, %v556
        %v558 = vpop.f32.mrb[0].mxu0
        %v559 = vpop.f32.mrb[0].mxu0
        %v560 = vadd.f32 %v476, %v559
        %v561 = vpop.f32.mrb[0].mxu0
        %562 = vmatprep.mubr.bf16.mxu0 0
        %563 = vmatmul.mubr.bf16.gmra.mrb[0].mxu0 %v520
        %v564 = vpop.f32.mrb[0].mxu0
        %v565 = vadd.f32 %v481, %v564
        %v566 = vpop.f32.mrb[0].mxu0
        %v567 = vpop.f32.mrb[0].mxu0
        %v568 = vadd.f32 %v486, %v567
        %v569 = vpop.f32.mrb[0].mxu0
        %570 = vdwg.mxu0
        %572 = vset.pattern.permute.xlu0 0
        %573 = vperm.xlu0 %572, %v350
        %v574 = vpop.permute.xlu0 %573
        %577 = vset.pattern.permute.xlu0 0
        %578 = vperm.xlu0 %577, %v351
        %v579 = vpop.permute.xlu0 %578
        %582 = vset.pattern.permute.xlu0 0
        %583 = vperm.xlu0 %582, %v352
        %v584 = vpop.permute.xlu0 %583
        %587 = vset.pattern.permute.xlu0 0
        %588 = vperm.xlu0 %587, %v353
        %v589 = vpop.permute.xlu0 %588
        %v595 = vunpack.c.l.b16 %v331
        %v596 = vunpack.c.l.b16 %v332
        %v597 = vunpack.c.l.b16 %v333
        %v598 = vunpack.c.l.b16 %v334
        %v599 = vpack.c.b16 %v596, %v595
        %v600 = vpack.c.b16 %v598, %v597
        %603 = vxpose.xlu0.c.b16.start [1/8] %v599, 128
        %604 = vxpose.xlu0.c.b16.cont [2/8] %v600, 128
        %605 = vxpose.xlu0.c.b16.cont [3/8] 0, 128
        %606 = vxpose.xlu0.c.b16.cont [4/8] 0, 128
        %607 = vxpose.xlu0.c.b16.cont [5/8] 0, 128
        %608 = vxpose.xlu0.c.b16.cont [6/8] 0, 128
        %609 = vxpose.xlu0.c.b16.cont [7/8] 0, 128
        %610 = vxpose.xlu0.c.b16.end [8/8] 0, 128
        %v611 = vpop.trf.xlu0
        %v612 = vpop.trf.xlu0
        %v613 = vpop.trf.xlu0
        %v614 = vpop.trf.xlu0
        %v615 = vpop.trf.xlu0
        %v616 = vpop.trf.xlu0
        %v617 = vpop.trf.xlu0
        %v618 = vpop.trf.xlu0
        %v620 = vsel %vm409, %v611, 0
        %v623 = vsel %vm409, %v612, 0
        %625 = vmatprep.subr.bf16.mxu0 0
        %626 = vmatpush1.bf16.xpose.msra.mxu0 %v417
        %627 = vmatprep.subr.bf16.mxu0 0
        %628 = vmatpush1.bf16.xpose.msra.mxu0 0
        %629 = vmatprep.subr.bf16.mxu0 0
        %630 = vmatpush1.bf16.xpose.msra.mxu0 0
        %631 = vmatprep.subr.bf16.mxu0 0
        %632 = vmatpush1.bf16.xpose.msra.mxu0 0
        %633 = vmatprep.subr.bf16.mxu0 0
        %634 = vmatpush1.bf16.xpose.msra.mxu0 0
        %635 = vmatprep.subr.bf16.mxu0 0
        %636 = vmatpush1.bf16.xpose.msra.mxu0 0
        %637 = vmatprep.subr.bf16.mxu0 0
        %638 = vmatpush1.bf16.xpose.msra.mxu0 0
        %639 = vmatprep.subr.bf16.mxu0 0
        %640 = vmatpush1.bf16.xpose.msra.mxu0 0
        %641 = vmatprep.subr.bf16.mxu0 0
        %642 = vmatpush1.bf16.xpose.msra.mxu0 0
        %643 = vmatprep.subr.bf16.mxu0 0
        %644 = vmatpush1.bf16.xpose.msra.mxu0 0
        %645 = vmatprep.subr.bf16.mxu0 0
        %646 = vmatpush1.bf16.xpose.msra.mxu0 0
        %647 = vmatprep.subr.bf16.mxu0 0
        %648 = vmatpush1.bf16.xpose.msra.mxu0 0
        %649 = vmatprep.subr.bf16.mxu0 0
        %650 = vmatpush1.bf16.xpose.msra.mxu0 0
        %651 = vmatprep.subr.bf16.mxu0 0
        %652 = vmatpush1.bf16.xpose.msra.mxu0 0
        %653 = vmatprep.subr.bf16.mxu0 0
        %654 = vmatpush1.bf16.xpose.msra.mxu0 0
        %655 = vmatprep.subr.bf16.mxu0 0
        %656 = vmatpush1.bf16.xpose.msra.mxu0 0
        %657 = vmatprep.mubr.bf16.mxu0 0
        %658 = vmatmul.mubr.bf16.gmra.mrb[0].mxu0 %v620
        %v659 = vpop.f32.mrb[0].mxu0
        %v660 = vadd.f32 %v574, %v659
        %v661 = vpop.f32.mrb[0].mxu0
        %v662 = vpop.f32.mrb[0].mxu0
        %v663 = vadd.f32 %v579, %v662
        %v664 = vpop.f32.mrb[0].mxu0
        %665 = vmatprep.mubr.bf16.mxu0 0
        %666 = vmatmul.mubr.bf16.gmra.mrb[0].mxu0 %v623
        %v667 = vpop.f32.mrb[0].mxu0
        %v668 = vadd.f32 %v584, %v667
        %v669 = vpop.f32.mrb[0].mxu0
        %v670 = vpop.f32.mrb[0].mxu0
        %v671 = vadd.f32 %v589, %v670
        %v672 = vpop.f32.mrb[0].mxu0
        %673 = vdwg.mxu0
        %v674 = vpack.c.bf16 %v454, %v454
        %v675 = vpack.c.bf16 %v457, %v457
        %v676 = vpack.c.bf16 %v462, %v462
        %v677 = vpack.c.bf16 %v465, %v465
        %v678 = vpack.c.bf16 %v557, %v557
        %v679 = vpack.c.bf16 %v560, %v560
        %v680 = vpack.c.bf16 %v565, %v565
        %v681 = vpack.c.bf16 %v568, %v568
        %682 = vxpose.xlu0.c.b16.start [1/8] %v674, 128
        %683 = vxpose.xlu0.c.b16.cont [2/8] 0, 128
        %684 = vxpose.xlu0.c.b16.cont [3/8] 0, 128
        %685 = vxpose.xlu0.c.b16.cont [4/8] 0, 128
        %686 = vxpose.xlu0.c.b16.cont [5/8] 0, 128
        %687 = vxpose.xlu0.c.b16.cont [6/8] 0, 128
        %688 = vxpose.xlu0.c.b16.cont [7/8] 0, 128
        %689 = vxpose.xlu0.c.b16.end [8/8] 0, 128
        %v690 = vpop.trf.xlu0
        %v691 = vpop.trf.xlu0
        %v692 = vpop.trf.xlu0
        %v693 = vpop.trf.xlu0
        %v694 = vpop.trf.xlu0
        %v695 = vpop.trf.xlu0
        %v696 = vpop.trf.xlu0
        %v697 = vpop.trf.xlu0
        %vm698 = vcmask 64512
        %v700 = vsel %vm698, %v690, 0
        %vm702 = vcmask 1043456
        %v704 = vsel %vm702, %v678, 0
        %706 = vmatprep.subr.bf16.mxu0 0
        %707 = vmatpush1.bf16.msra.mxu0 %v704
        %708 = vmatprep.subr.bf16.mxu0 0
        %709 = vmatpush1.bf16.msra.mxu0 0
        %710 = vmatprep.subr.bf16.mxu0 0
        %711 = vmatpush1.bf16.msra.mxu0 0
        %712 = vmatprep.subr.bf16.mxu0 0
        %713 = vmatpush1.bf16.msra.mxu0 0
        %714 = vmatprep.subr.bf16.mxu0 0
        %715 = vmatpush1.bf16.msra.mxu0 0
        %716 = vmatprep.subr.bf16.mxu0 0
        %717 = vmatpush1.bf16.msra.mxu0 0
        %718 = vmatprep.subr.bf16.mxu0 0
        %719 = vmatpush1.bf16.msra.mxu0 0
        %720 = vmatprep.subr.bf16.mxu0 0
        %721 = vmatpush1.bf16.msra.mxu0 0
        %722 = vmatprep.subr.bf16.mxu0 0
        %723 = vmatpush1.bf16.msra.mxu0 0
        %724 = vmatprep.subr.bf16.mxu0 0
        %725 = vmatpush1.bf16.msra.mxu0 0
        %726 = vmatprep.subr.bf16.mxu0 0
        %727 = vmatpush1.bf16.msra.mxu0 0
        %728 = vmatprep.subr.bf16.mxu0 0
        %729 = vmatpush1.bf16.msra.mxu0 0
        %730 = vmatprep.subr.bf16.mxu0 0
        %731 = vmatpush1.bf16.msra.mxu0 0
        %732 = vmatprep.subr.bf16.mxu0 0
        %733 = vmatpush1.bf16.msra.mxu0 0
        %734 = vmatprep.subr.bf16.mxu0 0
        %735 = vmatpush1.bf16.msra.mxu0 0
        %736 = vmatprep.subr.bf16.mxu0 0
        %737 = vmatpush1.bf16.msra.mxu0 0
        %738 = vmatprep.mubr.bf16.mxu0 0
        %739 = vmatmul.mubr.bf16.gmra.mrb[0].mxu0 %v700
        %v740 = vpop.f32.mrb[0].mxu0
        %v741 = vadd.f32 0.0, %v740
        %v742 = vpop.f32.mrb[0].mxu0
        %v743 = vpop.f32.mrb[0].mxu0
        %v744 = vpop.f32.mrb[0].mxu0
        %745 = vdwg.mxu0
        %746 = vxpose.xlu0.c.b16.start [1/8] %v675, 128
        %747 = vxpose.xlu0.c.b16.cont [2/8] 0, 128
        %748 = vxpose.xlu0.c.b16.cont [3/8] 0, 128
        %749 = vxpose.xlu0.c.b16.cont [4/8] 0, 128
        %750 = vxpose.xlu0.c.b16.cont [5/8] 0, 128
        %751 = vxpose.xlu0.c.b16.cont [6/8] 0, 128
        %752 = vxpose.xlu0.c.b16.cont [7/8] 0, 128
        %753 = vxpose.xlu0.c.b16.end [8/8] 0, 128
        %v754 = vpop.trf.xlu0
        %v755 = vpop.trf.xlu0
        %v756 = vpop.trf.xlu0
        %v757 = vpop.trf.xlu0
        %v758 = vpop.trf.xlu0
        %v759 = vpop.trf.xlu0
        %v760 = vpop.trf.xlu0
        %v761 = vpop.trf.xlu0
        %v763 = vsel %vm698, %v754, 0
        %v766 = vsel %vm702, %v679, 0
        %768 = vmatprep.subr.bf16.mxu0 0
        %769 = vmatpush1.bf16.msra.mxu0 %v766
        %770 = vmatprep.subr.bf16.mxu0 0
        %771 = vmatpush1.bf16.msra.mxu0 0
        %772 = vmatprep.subr.bf16.mxu0 0
        %773 = vmatpush1.bf16.msra.mxu0 0
        %774 = vmatprep.subr.bf16.mxu0 0
        %775 = vmatpush1.bf16.msra.mxu0 0
        %776 = vmatprep.subr.bf16.mxu0 0
        %777 = vmatpush1.bf16.msra.mxu0 0
        %778 = vmatprep.subr.bf16.mxu0 0
        %779 = vmatpush1.bf16.msra.mxu0 0
        %780 = vmatprep.subr.bf16.mxu0 0
        %781 = vmatpush1.bf16.msra.mxu0 0
        %782 = vmatprep.subr.bf16.mxu0 0
        %783 = vmatpush1.bf16.msra.mxu0 0
        %784 = vmatprep.subr.bf16.mxu0 0
        %785 = vmatpush1.bf16.msra.mxu0 0
        %786 = vmatprep.subr.bf16.mxu0 0
        %787 = vmatpush1.bf16.msra.mxu0 0
        %788 = vmatprep.subr.bf16.mxu0 0
        %789 = vmatpush1.bf16.msra.mxu0 0
        %790 = vmatprep.subr.bf16.mxu0 0
        %791 = vmatpush1.bf16.msra.mxu0 0
        %792 = vmatprep.subr.bf16.mxu0 0
        %793 = vmatpush1.bf16.msra.mxu0 0
        %794 = vmatprep.subr.bf16.mxu0 0
        %795 = vmatpush1.bf16.msra.mxu0 0
        %796 = vmatprep.subr.bf16.mxu0 0
        %797 = vmatpush1.bf16.msra.mxu0 0
        %798 = vmatprep.subr.bf16.mxu0 0
        %799 = vmatpush1.bf16.msra.mxu0 0
        %800 = vmatprep.mubr.bf16.mxu0 0
        %801 = vmatmul.mubr.bf16.gmra.mrb[0].mxu0 %v763
        %v802 = vpop.f32.mrb[0].mxu0
        %v803 = vadd.f32 0.0, %v802
        %v804 = vpop.f32.mrb[0].mxu0
        %v805 = vpop.f32.mrb[0].mxu0
        %v806 = vpop.f32.mrb[0].mxu0
        %807 = vdwg.mxu0
        %808 = vxpose.xlu0.c.b16.start [1/8] %v676, 128
        %809 = vxpose.xlu0.c.b16.cont [2/8] 0, 128
        %810 = vxpose.xlu0.c.b16.cont [3/8] 0, 128
        %811 = vxpose.xlu0.c.b16.cont [4/8] 0, 128
        %812 = vxpose.xlu0.c.b16.cont [5/8] 0, 128
        %813 = vxpose.xlu0.c.b16.cont [6/8] 0, 128
        %814 = vxpose.xlu0.c.b16.cont [7/8] 0, 128
        %815 = vxpose.xlu0.c.b16.end [8/8] 0, 128
        %v816 = vpop.trf.xlu0
        %v817 = vpop.trf.xlu0
        %v818 = vpop.trf.xlu0
        %v819 = vpop.trf.xlu0
        %v820 = vpop.trf.xlu0
        %v821 = vpop.trf.xlu0
        %v822 = vpop.trf.xlu0
        %v823 = vpop.trf.xlu0
        %v825 = vsel %vm698, %v816, 0
        %v828 = vsel %vm702, %v680, 0
        %830 = vmatprep.subr.bf16.mxu0 0
        %831 = vmatpush1.bf16.msra.mxu0 %v828
        %832 = vmatprep.subr.bf16.mxu0 0
        %833 = vmatpush1.bf16.msra.mxu0 0
        %834 = vmatprep.subr.bf16.mxu0 0
        %835 = vmatpush1.bf16.msra.mxu0 0
        %836 = vmatprep.subr.bf16.mxu0 0
        %837 = vmatpush1.bf16.msra.mxu0 0
        %838 = vmatprep.subr.bf16.mxu0 0
        %839 = vmatpush1.bf16.msra.mxu0 0
        %840 = vmatprep.subr.bf16.mxu0 0
        %841 = vmatpush1.bf16.msra.mxu0 0
        %842 = vmatprep.subr.bf16.mxu0 0
        %843 = vmatpush1.bf16.msra.mxu0 0
        %844 = vmatprep.subr.bf16.mxu0 0
        %845 = vmatpush1.bf16.msra.mxu0 0
        %846 = vmatprep.subr.bf16.mxu0 0
        %847 = vmatpush1.bf16.msra.mxu0 0
        %848 = vmatprep.subr.bf16.mxu0 0
        %849 = vmatpush1.bf16.msra.mxu0 0
        %850 = vmatprep.subr.bf16.mxu0 0
        %851 = vmatpush1.bf16.msra.mxu0 0
        %852 = vmatprep.subr.bf16.mxu0 0
        %853 = vmatpush1.bf16.msra.mxu0 0
        %854 = vmatprep.subr.bf16.mxu0 0
        %855 = vmatpush1.bf16.msra.mxu0 0
        %856 = vmatprep.subr.bf16.mxu0 0
        %857 = vmatpush1.bf16.msra.mxu0 0
        %858 = vmatprep.subr.bf16.mxu0 0
        %859 = vmatpush1.bf16.msra.mxu0 0
        %860 = vmatprep.subr.bf16.mxu0 0
        %861 = vmatpush1.bf16.msra.mxu0 0
        %862 = vmatprep.mubr.bf16.mxu0 0
        %863 = vmatmul.mubr.bf16.gmra.mrb[0].mxu0 %v825
        %v864 = vpop.f32.mrb[0].mxu0
        %v865 = vadd.f32 0.0, %v864
        %v866 = vpop.f32.mrb[0].mxu0
        %v867 = vpop.f32.mrb[0].mxu0
        %v868 = vpop.f32.mrb[0].mxu0
        %869 = vdwg.mxu0
        %870 = vxpose.xlu0.c.b16.start [1/8] %v677, 128
        %871 = vxpose.xlu0.c.b16.cont [2/8] 0, 128
        %872 = vxpose.xlu0.c.b16.cont [3/8] 0, 128
        %873 = vxpose.xlu0.c.b16.cont [4/8] 0, 128
        %874 = vxpose.xlu0.c.b16.cont [5/8] 0, 128
        %875 = vxpose.xlu0.c.b16.cont [6/8] 0, 128
        %876 = vxpose.xlu0.c.b16.cont [7/8] 0, 128
        %877 = vxpose.xlu0.c.b16.end [8/8] 0, 128
        %v878 = vpop.trf.xlu0
        %v879 = vpop.trf.xlu0
        %v880 = vpop.trf.xlu0
        %v881 = vpop.trf.xlu0
        %v882 = vpop.trf.xlu0
        %v883 = vpop.trf.xlu0
        %v884 = vpop.trf.xlu0
        %v885 = vpop.trf.xlu0
        %v887 = vsel %vm698, %v878, 0
        %v890 = vsel %vm702, %v681, 0
        %892 = vmatprep.subr.bf16.mxu0 0
        %893 = vmatpush1.bf16.msra.mxu0 %v890
        %894 = vmatprep.subr.bf16.mxu0 0
        %895 = vmatpush1.bf16.msra.mxu0 0
        %896 = vmatprep.subr.bf16.mxu0 0
        %897 = vmatpush1.bf16.msra.mxu0 0
        %898 = vmatprep.subr.bf16.mxu0 0
        %899 = vmatpush1.bf16.msra.mxu0 0
        %900 = vmatprep.subr.bf16.mxu0 0
        %901 = vmatpush1.bf16.msra.mxu0 0
        %902 = vmatprep.subr.bf16.mxu0 0
        %903 = vmatpush1.bf16.msra.mxu0 0
        %904 = vmatprep.subr.bf16.mxu0 0
        %905 = vmatpush1.bf16.msra.mxu0 0
        %906 = vmatprep.subr.bf16.mxu0 0
        %907 = vmatpush1.bf16.msra.mxu0 0
        %908 = vmatprep.subr.bf16.mxu0 0
        %909 = vmatpush1.bf16.msra.mxu0 0
        %910 = vmatprep.subr.bf16.mxu0 0
        %911 = vmatpush1.bf16.msra.mxu0 0
        %912 = vmatprep.subr.bf16.mxu0 0
        %913 = vmatpush1.bf16.msra.mxu0 0
        %914 = vmatprep.subr.bf16.mxu0 0
        %915 = vmatpush1.bf16.msra.mxu0 0
        %916 = vmatprep.subr.bf16.mxu0 0
        %917 = vmatpush1.bf16.msra.mxu0 0
        %918 = vmatprep.subr.bf16.mxu0 0
        %919 = vmatpush1.bf16.msra.mxu0 0
        %920 = vmatprep.subr.bf16.mxu0 0
        %921 = vmatpush1.bf16.msra.mxu0 0
        %922 = vmatprep.subr.bf16.mxu0 0
        %923 = vmatpush1.bf16.msra.mxu0 0
        %924 = vmatprep.mubr.bf16.mxu0 0
        %925 = vmatmul.mubr.bf16.gmra.mrb[0].mxu0 %v887
        %v926 = vpop.f32.mrb[0].mxu0
        %v927 = vadd.f32 0.0, %v926
        %v928 = vpop.f32.mrb[0].mxu0
        %v929 = vpop.f32.mrb[0].mxu0
        %v930 = vpop.f32.mrb[0].mxu0
        %931 = vdwg.mxu0
        %v932 = vmul.f32 %v741, 0.35355338
        %v933 = vmul.f32 %v803, 0.35355338
        %v934 = vmul.f32 %v865, 0.35355338
        %v935 = vmul.f32 %v927, 0.35355338
        %v936 = vsel %vm698, %v932, -inf
        %937 = vmax.xlane.f32.xlu0 %v936
        %v938 = vpop.xlane.xlu0 %937
        %v939 = vsel %vm698, %v933, -inf
        %940 = vmax.xlane.f32.xlu0 %v939
        %v941 = vpop.xlane.xlu0 %940
        %v942 = vsel %vm698, %v934, -inf
        %943 = vmax.xlane.f32.xlu0 %v942
        %v944 = vpop.xlane.xlu0 %943
        %v945 = vsel %vm698, %v935, -inf
        %946 = vmax.xlane.f32.xlu0 %v945
        %v947 = vpop.xlane.xlu0 %946
        %v948 = vsub.f32 %v932, %v938
        %v949 = vsub.f32 %v933, %v941
        %v950 = vsub.f32 %v934, %v944
        %v951 = vsub.f32 %v935, %v947
        %v952 = vmul.f32 %v948, 1.442695
        %v953 = vpow.pop %v952
        %v954 = vmul.f32 %v949, 1.442695
        %v955 = vpow.pop %v954
        %v956 = vmul.f32 %v950, 1.442695
        %v957 = vpow.pop %v956
        %v958 = vmul.f32 %v951, 1.442695
        %v959 = vpow.pop %v958
        %v960 = vsel %vm698, %v953, 0.0
        %961 = vadd.xlane.f32.xlu0 %v960
        %v962 = vpop.xlane.xlu0 %961
        %v963 = vsel %vm698, %v955, 0.0
        %964 = vadd.xlane.f32.xlu0 %v963
        %v965 = vpop.xlane.xlu0 %964
        %v966 = vsel %vm698, %v957, 0.0
        %967 = vadd.xlane.f32.xlu0 %v966
        %v968 = vpop.xlane.xlu0 %967
        %v969 = vsel %vm698, %v959, 0.0
        %970 = vadd.xlane.f32.xlu0 %v969
        %v971 = vpop.xlane.xlu0 %970
        %v972 = vrcp.pop %v962
        %v973 = vrcp.pop %v965
        %v974 = vrcp.pop %v968
        %v975 = vrcp.pop %v971
        %v976 = vmul.f32 %v953, %v972
        %v977 = vmul.f32 %v955, %v973
        %v978 = vmul.f32 %v957, %v974
        %v979 = vmul.f32 %v959, %v975
        %v980 = vpack.c.bf16 %v660, %v660
        %v981 = vpack.c.bf16 %v663, %v663
        %v982 = vpack.c.bf16 %v668, %v668
        %v983 = vpack.c.bf16 %v671, %v671
        %v984 = vpack.c.bf16 %v976, %v976
        %v985 = vpack.c.bf16 %v977, %v977
        %v986 = vpack.c.bf16 %v978, %v978
        %v987 = vpack.c.bf16 %v979, %v979
        %v989 = vsel %vm698, %v980, 0
        %v992 = vsel %vm698, %v984, 0
        %994 = vmatprep.subr.bf16.mxu0 0
        %995 = vmatpush1.bf16.xpose.msra.mxu0 %v992
        %996 = vmatprep.subr.bf16.mxu0 0
        %997 = vmatpush1.bf16.xpose.msra.mxu0 0
        %998 = vmatprep.subr.bf16.mxu0 0
        %999 = vmatpush1.bf16.xpose.msra.mxu0 0
        %1000 = vmatprep.subr.bf16.mxu0 0
        %1001 = vmatpush1.bf16.xpose.msra.mxu0 0
        %1002 = vmatprep.subr.bf16.mxu0 0
        %1003 = vmatpush1.bf16.xpose.msra.mxu0 0
        %1004 = vmatprep.subr.bf16.mxu0 0
        %1005 = vmatpush1.bf16.xpose.msra.mxu0 0
        %1006 = vmatprep.subr.bf16.mxu0 0
        %1007 = vmatpush1.bf16.xpose.msra.mxu0 0
        %1008 = vmatprep.subr.bf16.mxu0 0
        %1009 = vmatpush1.bf16.xpose.msra.mxu0 0
        %1010 = vmatprep.subr.bf16.mxu0 0
        %1011 = vmatpush1.bf16.xpose.msra.mxu0 0
        %1012 = vmatprep.subr.bf16.mxu0 0
        %1013 = vmatpush1.bf16.xpose.msra.mxu0 0
        %1014 = vmatprep.subr.bf16.mxu0 0
        %1015 = vmatpush1.bf16.xpose.msra.mxu0 0
        %1016 = vmatprep.subr.bf16.mxu0 0
        %1017 = vmatpush1.bf16.xpose.msra.mxu0 0
        %1018 = vmatprep.subr.bf16.mxu0 0
        %1019 = vmatpush1.bf16.xpose.msra.mxu0 0
        %1020 = vmatprep.subr.bf16.mxu0 0
        %1021 = vmatpush1.bf16.xpose.msra.mxu0 0
        %1022 = vmatprep.subr.bf16.mxu0 0
        %1023 = vmatpush1.bf16.xpose.msra.mxu0 0
        %1024 = vmatprep.subr.bf16.mxu0 0
        %1025 = vmatpush1.bf16.xpose.msra.mxu0 0
        %1026 = vmatprep.mubr.bf16.mxu0 0
        %1027 = vmatmul.mubr.bf16.gmra.mrb[0].mxu0 %v989
        %v1028 = vpop.f32.mrb[0].mxu0
        %v1029 = vadd.f32 0.0, %v1028
        %v1030 = vpop.f32.mrb[0].mxu0
        %v1031 = vpop.f32.mrb[0].mxu0
        %v1032 = vpop.f32.mrb[0].mxu0
        %1033 = vdwg.mxu0
        %v1035 = vsel %vm698, %v981, 0
        %v1038 = vsel %vm698, %v985, 0
        %1040 = vmatprep.subr.bf16.mxu0 0
        %1041 = vmatpush1.bf16.xpose.msra.mxu0 %v1038
        %1042 = vmatprep.subr.bf16.mxu0 0
        %1043 = vmatpush1.bf16.xpose.msra.mxu0 0
        %1044 = vmatprep.subr.bf16.mxu0 0
        %1045 = vmatpush1.bf16.xpose.msra.mxu0 0
        %1046 = vmatprep.subr.bf16.mxu0 0
        %1047 = vmatpush1.bf16.xpose.msra.mxu0 0
        %1048 = vmatprep.subr.bf16.mxu0 0
        %1049 = vmatpush1.bf16.xpose.msra.mxu0 0
        %1050 = vmatprep.subr.bf16.mxu0 0
        %1051 = vmatpush1.bf16.xpose.msra.mxu0 0
        %1052 = vmatprep.subr.bf16.mxu0 0
        %1053 = vmatpush1.bf16.xpose.msra.mxu0 0
        %1054 = vmatprep.subr.bf16.mxu0 0
        %1055 = vmatpush1.bf16.xpose.msra.mxu0 0
        %1056 = vmatprep.subr.bf16.mxu0 0
        %1057 = vmatpush1.bf16.xpose.msra.mxu0 0
        %1058 = vmatprep.subr.bf16.mxu0 0
        %1059 = vmatpush1.bf16.xpose.msra.mxu0 0
        %1060 = vmatprep.subr.bf16.mxu0 0
        %1061 = vmatpush1.bf16.xpose.msra.mxu0 0
        %1062 = vmatprep.subr.bf16.mxu0 0
        %1063 = vmatpush1.bf16.xpose.msra.mxu0 0
        %1064 = vmatprep.subr.bf16.mxu0 0
        %1065 = vmatpush1.bf16.xpose.msra.mxu0 0
        %1066 = vmatprep.subr.bf16.mxu0 0
        %1067 = vmatpush1.bf16.xpose.msra.mxu0 0
        %1068 = vmatprep.subr.bf16.mxu0 0
        %1069 = vmatpush1.bf16.xpose.msra.mxu0 0
        %1070 = vmatprep.subr.bf16.mxu0 0
        %1071 = vmatpush1.bf16.xpose.msra.mxu0 0
        %1072 = vmatprep.mubr.bf16.mxu0 0
        %1073 = vmatmul.mubr.bf16.gmra.mrb[0].mxu0 %v1035
        %v1074 = vpop.f32.mrb[0].mxu0
        %v1075 = vadd.f32 0.0, %v1074
        %v1076 = vpop.f32.mrb[0].mxu0
        %v1077 = vpop.f32.mrb[0].mxu0
        %v1078 = vpop.f32.mrb[0].mxu0
        %1079 = vdwg.mxu0
        %v1081 = vsel %vm698, %v982, 0
        %v1084 = vsel %vm698, %v986, 0
        %1086 = vmatprep.subr.bf16.mxu0 0
        %1087 = vmatpush1.bf16.xpose.msra.mxu0 %v1084
        %1088 = vmatprep.subr.bf16.mxu0 0
        %1089 = vmatpush1.bf16.xpose.msra.mxu0 0
        %1090 = vmatprep.subr.bf16.mxu0 0
        %1091 = vmatpush1.bf16.xpose.msra.mxu0 0
        %1092 = vmatprep.subr.bf16.mxu0 0
        %1093 = vmatpush1.bf16.xpose.msra.mxu0 0
        %1094 = vmatprep.subr.bf16.mxu0 0
        %1095 = vmatpush1.bf16.xpose.msra.mxu0 0
        %1096 = vmatprep.subr.bf16.mxu0 0
        %1097 = vmatpush1.bf16.xpose.msra.mxu0 0
        %1098 = vmatprep.subr.bf16.mxu0 0
        %1099 = vmatpush1.bf16.xpose.msra.mxu0 0
        %1100 = vmatprep.subr.bf16.mxu0 0
        %1101 = vmatpush1.bf16.xpose.msra.mxu0 0
        %1102 = vmatprep.subr.bf16.mxu0 0
        %1103 = vmatpush1.bf16.xpose.msra.mxu0 0
        %1104 = vmatprep.subr.bf16.mxu0 0
        %1105 = vmatpush1.bf16.xpose.msra.mxu0 0
        %1106 = vmatprep.subr.bf16.mxu0 0
        %1107 = vmatpush1.bf16.xpose.msra.mxu0 0
        %1108 = vmatprep.subr.bf16.mxu0 0
        %1109 = vmatpush1.bf16.xpose.msra.mxu0 0
        %1110 = vmatprep.subr.bf16.mxu0 0
        %1111 = vmatpush1.bf16.xpose.msra.mxu0 0
        %1112 = vmatprep.subr.bf16.mxu0 0
        %1113 = vmatpush1.bf16.xpose.msra.mxu0 0
        %1114 = vmatprep.subr.bf16.mxu0 0
        %1115 = vmatpush1.bf16.xpose.msra.mxu0 0
        %1116 = vmatprep.subr.bf16.mxu0 0
        %1117 = vmatpush1.bf16.xpose.msra.mxu0 0
        %1118 = vmatprep.mubr.bf16.mxu0 0
        %1119 = vmatmul.mubr.bf16.gmra.mrb[0].mxu0 %v1081
        %v1120 = vpop.f32.mrb[0].mxu0
        %v1121 = vadd.f32 0.0, %v1120
        %v1122 = vpop.f32.mrb[0].mxu0
        %v1123 = vpop.f32.mrb[0].mxu0
        %v1124 = vpop.f32.mrb[0].mxu0
        %1125 = vdwg.mxu0
        %v1127 = vsel %vm698, %v983, 0
        %v1130 = vsel %vm698, %v987, 0
        %1132 = vmatprep.subr.bf16.mxu0 0
        %1133 = vmatpush1.bf16.xpose.msra.mxu0 %v1130
        %1134 = vmatprep.subr.bf16.mxu0 0
        %1135 = vmatpush1.bf16.xpose.msra.mxu0 0
        %1136 = vmatprep.subr.bf16.mxu0 0
        %1137 = vmatpush1.bf16.xpose.msra.mxu0 0
        %1138 = vmatprep.subr.bf16.mxu0 0
        %1139 = vmatpush1.bf16.xpose.msra.mxu0 0
        %1140 = vmatprep.subr.bf16.mxu0 0
        %1141 = vmatpush1.bf16.xpose.msra.mxu0 0
        %1142 = vmatprep.subr.bf16.mxu0 0
        %1143 = vmatpush1.bf16.xpose.msra.mxu0 0
        %1144 = vmatprep.subr.bf16.mxu0 0
        %1145 = vmatpush1.bf16.xpose.msra.mxu0 0
        %1146 = vmatprep.subr.bf16.mxu0 0
        %1147 = vmatpush1.bf16.xpose.msra.mxu0 0
        %1148 = vmatprep.subr.bf16.mxu0 0
        %1149 = vmatpush1.bf16.xpose.msra.mxu0 0
        %1150 = vmatprep.subr.bf16.mxu0 0
        %1151 = vmatpush1.bf16.xpose.msra.mxu0 0
        %1152 = vmatprep.subr.bf16.mxu0 0
        %1153 = vmatpush1.bf16.xpose.msra.mxu0 0
        %1154 = vmatprep.subr.bf16.mxu0 0
        %1155 = vmatpush1.bf16.xpose.msra.mxu0 0
        %1156 = vmatprep.subr.bf16.mxu0 0
        %1157 = vmatpush1.bf16.xpose.msra.mxu0 0
        %1158 = vmatprep.subr.bf16.mxu0 0
        %1159 = vmatpush1.bf16.xpose.msra.mxu0 0
        %1160 = vmatprep.subr.bf16.mxu0 0
        %1161 = vmatpush1.bf16.xpose.msra.mxu0 0
        %1162 = vmatprep.subr.bf16.mxu0 0
        %1163 = vmatpush1.bf16.xpose.msra.mxu0 0
        %1164 = vmatprep.mubr.bf16.mxu0 0
        %1165 = vmatmul.mubr.bf16.gmra.mrb[0].mxu0 %v1127
        %v1166 = vpop.f32.mrb[0].mxu0
        %v1167 = vadd.f32 0.0, %v1166
        %v1168 = vpop.f32.mrb[0].mxu0
        %v1169 = vpop.f32.mrb[0].mxu0
        %v1170 = vpop.f32.mrb[0].mxu0
        %1171 = vdwg.mxu0
        %v1172 = vpack.c.bf16 %v1075, %v1029
        %v1173 = vpack.c.bf16 %v1167, %v1121
        %v1174 = vlaneseq
        %v1175 = vshrl.u32 %v1174, 7
        %v1176 = vsub.s32 0, %v1175
        %v1177 = vrot.slane %v354, %v1176
        %1178 = vxpose.xlu0.c.b16.start [1/8] %v1172, 128
        %1179 = vxpose.xlu0.c.b16.cont [2/8] %v1173, 128
        %1180 = vxpose.xlu0.c.b16.cont [3/8] 0, 128
        %1181 = vxpose.xlu0.c.b16.cont [4/8] 0, 128
        %1182 = vxpose.xlu0.c.b16.cont [5/8] 0, 128
        %1183 = vxpose.xlu0.c.b16.cont [6/8] 0, 128
        %1184 = vxpose.xlu0.c.b16.cont [7/8] 0, 128
        %1185 = vxpose.xlu0.c.b16.end [8/8] 0, 128
        %v1186 = vpop.trf.xlu0
        %v1187 = vpop.trf.xlu0
        %v1188 = vpop.trf.xlu0
        %v1189 = vpop.trf.xlu0
        %v1190 = vpop.trf.xlu0
        %v1191 = vpop.trf.xlu0
        %v1192 = vpop.trf.xlu0
        %v1193 = vpop.trf.xlu0
        %v1198 = vunpack.c.l.b16 %v336
        %v1199 = vunpack.c.l.b16 %v337
        %v1200 = vunpack.c.l.b16 %v338
        %v1201 = vunpack.c.l.b16 %v339
        %v1202 = vpack.c.b16 %v1199, %v1198
        %v1203 = vpack.c.b16 %v1201, %v1200
        %v1207 = vsel %vm409, %v1186, 0
        %1209 = vmatprep.subr.bf16.mxu0 0
        %1210 = vmatpush1.bf16.msra.mxu0 %v1202
        %1211 = vmatprep.subr.bf16.mxu0 0
        %1212 = vmatpush1.bf16.msra.mxu0 %v1203
        %1213 = vmatprep.subr.bf16.mxu0 0
        %1214 = vmatpush1.bf16.msra.mxu0 0
        %1215 = vmatprep.subr.bf16.mxu0 0
        %1216 = vmatpush1.bf16.msra.mxu0 0
        %1217 = vmatprep.subr.bf16.mxu0 0
        %1218 = vmatpush1.bf16.msra.mxu0 0
        %1219 = vmatprep.subr.bf16.mxu0 0
        %1220 = vmatpush1.bf16.msra.mxu0 0
        %1221 = vmatprep.subr.bf16.mxu0 0
        %1222 = vmatpush1.bf16.msra.mxu0 0
        %1223 = vmatprep.subr.bf16.mxu0 0
        %1224 = vmatpush1.bf16.msra.mxu0 0
        %1225 = vmatprep.subr.bf16.mxu0 0
        %1226 = vmatpush1.bf16.msra.mxu0 0
        %1227 = vmatprep.subr.bf16.mxu0 0
        %1228 = vmatpush1.bf16.msra.mxu0 0
        %1229 = vmatprep.subr.bf16.mxu0 0
        %1230 = vmatpush1.bf16.msra.mxu0 0
        %1231 = vmatprep.subr.bf16.mxu0 0
        %1232 = vmatpush1.bf16.msra.mxu0 0
        %1233 = vmatprep.subr.bf16.mxu0 0
        %1234 = vmatpush1.bf16.msra.mxu0 0
        %1235 = vmatprep.subr.bf16.mxu0 0
        %1236 = vmatpush1.bf16.msra.mxu0 0
        %1237 = vmatprep.subr.bf16.mxu0 0
        %1238 = vmatpush1.bf16.msra.mxu0 0
        %1239 = vmatprep.subr.bf16.mxu0 0
        %1240 = vmatpush1.bf16.msra.mxu0 0
        %1241 = vmatprep.mubr.bf16.mxu0 0
        %1242 = vmatmul.mubr.bf16.gmra.mrb[0].mxu0 %v1207
        %v1243 = vpop.f32.mrb[0].mxu0
        %v1244 = vadd.f32 %v1177, %v1243
        %v1245 = vpop.f32.mrb[0].mxu0
        %v1246 = vpop.f32.mrb[0].mxu0
        %v1247 = vpop.f32.mrb[0].mxu0
        %1248 = vdwg.mxu0
        %v1249 = vadd.f32 %v1244, %v319
        %v1250 = vsel %vm409, %v1249, 0.0
        %1251 = vadd.xlane.f32.xlu0 %v1250
        %v1252 = vpop.xlane.xlu0 %1251
        %v1253 = vrcp.pop 32.0
        %v1254 = vmul.f32 %v1252, %v1253
        %v1255 = vsub.f32 %v1249, %v1254
        %v1256 = vmul.f32 %v1255, %v1255
        %v1257 = vsel %vm409, %v1256, 0.0
        %1258 = vadd.xlane.f32.xlu0 %v1257
        %v1259 = vpop.xlane.xlu0 %1258
        %v1260 = vmul.f32 %v1259, %v1253
        %v1261 = vadd.f32 %v1260, 1e-06
        %v1262 = vrsqrt.pop %v1261
        %v1263 = vmul.f32 %v1255, %v1262
        %v1264 = vlaneseq
        %v1265 = vshrl.u32 %v1264, 7
        %v1266 = vsub.s32 0, %v1265
        %v1267 = vrot.slane %v355, %v1266
        %v1268 = vmul.f32 %v1263, %v1267
        %v1269 = vlaneseq
        %v1270 = vshrl.u32 %v1269, 7
        %v1271 = vsub.s32 0, %v1270
        %v1272 = vrot.slane %v356, %v1271
        %v1273 = vadd.f32 %v1268, %v1272
        %v1274 = vpack.c.bf16 %v1273, %v1273
        %v1275 = vpack.c.bf16 %v320, %v320
        %v1277 = vsel %vm409, %v1274, 0
        %1279 = vmatprep.subr.bf16.mxu0 0
        %1280 = vmatpush1.bf16.xpose.msra.mxu0 %v1277
        %1281 = vmatprep.subr.bf16.mxu0 0
        %1282 = vmatpush1.bf16.xpose.msra.mxu0 0
        %1283 = vmatprep.subr.bf16.mxu0 0
        %1284 = vmatpush1.bf16.xpose.msra.mxu0 0
        %1285 = vmatprep.subr.bf16.mxu0 0
        %1286 = vmatpush1.bf16.xpose.msra.mxu0 0
        %1287 = vmatprep.subr.bf16.mxu0 0
        %1288 = vmatpush1.bf16.xpose.msra.mxu0 0
        %1289 = vmatprep.subr.bf16.mxu0 0
        %1290 = vmatpush1.bf16.xpose.msra.mxu0 0
        %1291 = vmatprep.subr.bf16.mxu0 0
        %1292 = vmatpush1.bf16.xpose.msra.mxu0 0
        %1293 = vmatprep.subr.bf16.mxu0 0
        %1294 = vmatpush1.bf16.xpose.msra.mxu0 0
        %1295 = vmatprep.subr.bf16.mxu0 0
        %1296 = vmatpush1.bf16.xpose.msra.mxu0 0
        %1297 = vmatprep.subr.bf16.mxu0 0
        %1298 = vmatpush1.bf16.xpose.msra.mxu0 0
        %1299 = vmatprep.subr.bf16.mxu0 0
        %1300 = vmatpush1.bf16.xpose.msra.mxu0 0
        %1301 = vmatprep.subr.bf16.mxu0 0
        %1302 = vmatpush1.bf16.xpose.msra.mxu0 0
        %1303 = vmatprep.subr.bf16.mxu0 0
        %1304 = vmatpush1.bf16.xpose.msra.mxu0 0
        %1305 = vmatprep.subr.bf16.mxu0 0
        %1306 = vmatpush1.bf16.xpose.msra.mxu0 0
        %1307 = vmatprep.subr.bf16.mxu0 0
        %1308 = vmatpush1.bf16.xpose.msra.mxu0 0
        %1309 = vmatprep.subr.bf16.mxu0 0
        %1310 = vmatpush1.bf16.xpose.msra.mxu0 0
        %1311 = vmatprep.mubr.bf16.mxu0 0
        %1312 = vmatmul.mubr.bf16.gmra.mrb[0].mxu0 %v411
        %v1313 = vpop.f32.mrb[0].mxu0
        %v1314 = vadd.f32 %v364, %v1313
        %v1315 = vpop.f32.mrb[0].mxu0
        %v1316 = vpop.f32.mrb[0].mxu0
        %v1317 = vadd.f32 %v369, %v1316
        %v1318 = vpop.f32.mrb[0].mxu0
        %1319 = vmatprep.mubr.bf16.mxu0 0
        %1320 = vmatmul.mubr.bf16.gmra.mrb[0].mxu0 %v414
        %v1321 = vpop.f32.mrb[0].mxu0
        %v1322 = vadd.f32 %v374, %v1321
        %v1323 = vpop.f32.mrb[0].mxu0
        %v1324 = vpop.f32.mrb[0].mxu0
        %v1325 = vadd.f32 %v379, %v1324
        %v1326 = vpop.f32.mrb[0].mxu0
        %1327 = vdwg.mxu0
        %v1329 = vsel %vm409, %v1275, 0
        %1331 = vmatprep.subr.bf16.mxu0 0
        %1332 = vmatpush1.bf16.xpose.msra.mxu0 %v1329
        %1333 = vmatprep.subr.bf16.mxu0 0
        %1334 = vmatpush1.bf16.xpose.msra.mxu0 0
        %1335 = vmatprep.subr.bf16.mxu0 0
        %1336 = vmatpush1.bf16.xpose.msra.mxu0 0
        %1337 = vmatprep.subr.bf16.mxu0 0
        %1338 = vmatpush1.bf16.xpose.msra.mxu0 0
        %1339 = vmatprep.subr.bf16.mxu0 0
        %1340 = vmatpush1.bf16.xpose.msra.mxu0 0
        %1341 = vmatprep.subr.bf16.mxu0 0
        %1342 = vmatpush1.bf16.xpose.msra.mxu0 0
        %1343 = vmatprep.subr.bf16.mxu0 0
        %1344 = vmatpush1.bf16.xpose.msra.mxu0 0
        %1345 = vmatprep.subr.bf16.mxu0 0
        %1346 = vmatpush1.bf16.xpose.msra.mxu0 0
        %1347 = vmatprep.subr.bf16.mxu0 0
        %1348 = vmatpush1.bf16.xpose.msra.mxu0 0
        %1349 = vmatprep.subr.bf16.mxu0 0
        %1350 = vmatpush1.bf16.xpose.msra.mxu0 0
        %1351 = vmatprep.subr.bf16.mxu0 0
        %1352 = vmatpush1.bf16.xpose.msra.mxu0 0
        %1353 = vmatprep.subr.bf16.mxu0 0
        %1354 = vmatpush1.bf16.xpose.msra.mxu0 0
        %1355 = vmatprep.subr.bf16.mxu0 0
        %1356 = vmatpush1.bf16.xpose.msra.mxu0 0
        %1357 = vmatprep.subr.bf16.mxu0 0
        %1358 = vmatpush1.bf16.xpose.msra.mxu0 0
        %1359 = vmatprep.subr.bf16.mxu0 0
        %1360 = vmatpush1.bf16.xpose.msra.mxu0 0
        %1361 = vmatprep.subr.bf16.mxu0 0
        %1362 = vmatpush1.bf16.xpose.msra.mxu0 0
        %1363 = vmatprep.mubr.bf16.mxu0 0
        %1364 = vmatmul.mubr.bf16.gmra.mrb[0].mxu0 %v517
        %v1365 = vpop.f32.mrb[0].mxu0
        %v1366 = vadd.f32 %v471, %v1365
        %v1367 = vpop.f32.mrb[0].mxu0
        %v1368 = vpop.f32.mrb[0].mxu0
        %v1369 = vadd.f32 %v476, %v1368
        %v1370 = vpop.f32.mrb[0].mxu0
        %1371 = vmatprep.mubr.bf16.mxu0 0
        %1372 = vmatmul.mubr.bf16.gmra.mrb[0].mxu0 %v520
        %v1373 = vpop.f32.mrb[0].mxu0
        %v1374 = vadd.f32 %v481, %v1373
        %v1375 = vpop.f32.mrb[0].mxu0
        %v1376 = vpop.f32.mrb[0].mxu0
        %v1377 = vadd.f32 %v486, %v1376
        %v1378 = vpop.f32.mrb[0].mxu0
        %1379 = vdwg.mxu0
        %1380 = vmatprep.subr.bf16.mxu0 0
        %1381 = vmatpush1.bf16.xpose.msra.mxu0 %v1329
        %1382 = vmatprep.subr.bf16.mxu0 0
        %1383 = vmatpush1.bf16.xpose.msra.mxu0 0
        %1384 = vmatprep.subr.bf16.mxu0 0
        %1385 = vmatpush1.bf16.xpose.msra.mxu0 0
        %1386 = vmatprep.subr.bf16.mxu0 0
        %1387 = vmatpush1.bf16.xpose.msra.mxu0 0
        %1388 = vmatprep.subr.bf16.mxu0 0
        %1389 = vmatpush1.bf16.xpose.msra.mxu0 0
        %1390 = vmatprep.subr.bf16.mxu0 0
        %1391 = vmatpush1.bf16.xpose.msra.mxu0 0
        %1392 = vmatprep.subr.bf16.mxu0 0
        %1393 = vmatpush1.bf16.xpose.msra.mxu0 0
        %1394 = vmatprep.subr.bf16.mxu0 0
        %1395 = vmatpush1.bf16.xpose.msra.mxu0 0
        %1396 = vmatprep.subr.bf16.mxu0 0
        %1397 = vmatpush1.bf16.xpose.msra.mxu0 0
        %1398 = vmatprep.subr.bf16.mxu0 0
        %1399 = vmatpush1.bf16.xpose.msra.mxu0 0
        %1400 = vmatprep.subr.bf16.mxu0 0
        %1401 = vmatpush1.bf16.xpose.msra.mxu0 0
        %1402 = vmatprep.subr.bf16.mxu0 0
        %1403 = vmatpush1.bf16.xpose.msra.mxu0 0
        %1404 = vmatprep.subr.bf16.mxu0 0
        %1405 = vmatpush1.bf16.xpose.msra.mxu0 0
        %1406 = vmatprep.subr.bf16.mxu0 0
        %1407 = vmatpush1.bf16.xpose.msra.mxu0 0
        %1408 = vmatprep.subr.bf16.mxu0 0
        %1409 = vmatpush1.bf16.xpose.msra.mxu0 0
        %1410 = vmatprep.subr.bf16.mxu0 0
        %1411 = vmatpush1.bf16.xpose.msra.mxu0 0
        %1412 = vmatprep.mubr.bf16.mxu0 0
        %1413 = vmatmul.mubr.bf16.gmra.mrb[0].mxu0 %v620
        %v1414 = vpop.f32.mrb[0].mxu0
        %v1415 = vadd.f32 %v574, %v1414
        %v1416 = vpop.f32.mrb[0].mxu0
        %v1417 = vpop.f32.mrb[0].mxu0
        %v1418 = vadd.f32 %v579, %v1417
        %v1419 = vpop.f32.mrb[0].mxu0
        %1420 = vmatprep.mubr.bf16.mxu0 0
        %1421 = vmatmul.mubr.bf16.gmra.mrb[0].mxu0 %v623
        %v1422 = vpop.f32.mrb[0].mxu0
        %v1423 = vadd.f32 %v584, %v1422
        %v1424 = vpop.f32.mrb[0].mxu0
        %v1425 = vpop.f32.mrb[0].mxu0
        %v1426 = vadd.f32 %v589, %v1425
        %v1427 = vpop.f32.mrb[0].mxu0
        %1428 = vdwg.mxu0
        %v1429 = vpack.c.bf16 %v1314, %v1314
        %v1430 = vpack.c.bf16 %v1317, %v1317
        %v1431 = vpack.c.bf16 %v1322, %v1322
        %v1432 = vpack.c.bf16 %v1325, %v1325
        %v1433 = vpack.c.bf16 %v1366, %v1366
        %v1434 = vpack.c.bf16 %v1369, %v1369
        %v1435 = vpack.c.bf16 %v1374, %v1374
        %v1436 = vpack.c.bf16 %v1377, %v1377
        %1437 = vxpose.xlu0.c.b16.start [1/8] %v1429, 128
        %1438 = vxpose.xlu0.c.b16.cont [2/8] 0, 128
        %1439 = vxpose.xlu0.c.b16.cont [3/8] 0, 128
        %1440 = vxpose.xlu0.c.b16.cont [4/8] 0, 128
        %1441 = vxpose.xlu0.c.b16.cont [5/8] 0, 128
        %1442 = vxpose.xlu0.c.b16.cont [6/8] 0, 128
        %1443 = vxpose.xlu0.c.b16.cont [7/8] 0, 128
        %1444 = vxpose.xlu0.c.b16.end [8/8] 0, 128
        %v1445 = vpop.trf.xlu0
        %v1446 = vpop.trf.xlu0
        %v1447 = vpop.trf.xlu0
        %v1448 = vpop.trf.xlu0
        %v1449 = vpop.trf.xlu0
        %v1450 = vpop.trf.xlu0
        %v1451 = vpop.trf.xlu0
        %v1452 = vpop.trf.xlu0
        %v1454 = vsel %vm698, %v1445, 0
        %v1457 = vsel %vm702, %v1433, 0
        %1459 = vmatprep.subr.bf16.mxu0 0
        %1460 = vmatpush1.bf16.msra.mxu0 %v1457
        %1461 = vmatprep.subr.bf16.mxu0 0
        %1462 = vmatpush1.bf16.msra.mxu0 0
        %1463 = vmatprep.subr.bf16.mxu0 0
        %1464 = vmatpush1.bf16.msra.mxu0 0
        %1465 = vmatprep.subr.bf16.mxu0 0
        %1466 = vmatpush1.bf16.msra.mxu0 0
        %1467 = vmatprep.subr.bf16.mxu0 0
        %1468 = vmatpush1.bf16.msra.mxu0 0
        %1469 = vmatprep.subr.bf16.mxu0 0
        %1470 = vmatpush1.bf16.msra.mxu0 0
        %1471 = vmatprep.subr.bf16.mxu0 0
        %1472 = vmatpush1.bf16.msra.mxu0 0
        %1473 = vmatprep.subr.bf16.mxu0 0
        %1474 = vmatpush1.bf16.msra.mxu0 0
        %1475 = vmatprep.subr.bf16.mxu0 0
        %1476 = vmatpush1.bf16.msra.mxu0 0
        %1477 = vmatprep.subr.bf16.mxu0 0
        %1478 = vmatpush1.bf16.msra.mxu0 0
        %1479 = vmatprep.subr.bf16.mxu0 0
        %1480 = vmatpush1.bf16.msra.mxu0 0
        %1481 = vmatprep.subr.bf16.mxu0 0
        %1482 = vmatpush1.bf16.msra.mxu0 0
        %1483 = vmatprep.subr.bf16.mxu0 0
        %1484 = vmatpush1.bf16.msra.mxu0 0
        %1485 = vmatprep.subr.bf16.mxu0 0
        %1486 = vmatpush1.bf16.msra.mxu0 0
        %1487 = vmatprep.subr.bf16.mxu0 0
        %1488 = vmatpush1.bf16.msra.mxu0 0
        %1489 = vmatprep.subr.bf16.mxu0 0
        %1490 = vmatpush1.bf16.msra.mxu0 0
        %1491 = vmatprep.mubr.bf16.mxu0 0
        %1492 = vmatmul.mubr.bf16.gmra.mrb[0].mxu0 %v1454
        %v1493 = vpop.f32.mrb[0].mxu0
        %v1494 = vadd.f32 0.0, %v1493
        %v1495 = vpop.f32.mrb[0].mxu0
        %v1496 = vpop.f32.mrb[0].mxu0
        %v1497 = vpop.f32.mrb[0].mxu0
        %1498 = vdwg.mxu0
        %1499 = vxpose.xlu0.c.b16.start [1/8] %v1430, 128
        %1500 = vxpose.xlu0.c.b16.cont [2/8] 0, 128
        %1501 = vxpose.xlu0.c.b16.cont [3/8] 0, 128
        %1502 = vxpose.xlu0.c.b16.cont [4/8] 0, 128
        %1503 = vxpose.xlu0.c.b16.cont [5/8] 0, 128
        %1504 = vxpose.xlu0.c.b16.cont [6/8] 0, 128
        %1505 = vxpose.xlu0.c.b16.cont [7/8] 0, 128
        %1506 = vxpose.xlu0.c.b16.end [8/8] 0, 128
        %v1507 = vpop.trf.xlu0
        %v1508 = vpop.trf.xlu0
        %v1509 = vpop.trf.xlu0
        %v1510 = vpop.trf.xlu0
        %v1511 = vpop.trf.xlu0
        %v1512 = vpop.trf.xlu0
        %v1513 = vpop.trf.xlu0
        %v1514 = vpop.trf.xlu0
        %v1516 = vsel %vm698, %v1507, 0
        %v1519 = vsel %vm702, %v1434, 0
        %1521 = vmatprep.subr.bf16.mxu0 0
        %1522 = vmatpush1.bf16.msra.mxu0 %v1519
        %1523 = vmatprep.subr.bf16.mxu0 0
        %1524 = vmatpush1.bf16.msra.mxu0 0
        %1525 = vmatprep.subr.bf16.mxu0 0
        %1526 = vmatpush1.bf16.msra.mxu0 0
        %1527 = vmatprep.subr.bf16.mxu0 0
        %1528 = vmatpush1.bf16.msra.mxu0 0
        %1529 = vmatprep.subr.bf16.mxu0 0
        %1530 = vmatpush1.bf16.msra.mxu0 0
        %1531 = vmatprep.subr.bf16.mxu0 0
        %1532 = vmatpush1.bf16.msra.mxu0 0
        %1533 = vmatprep.subr.bf16.mxu0 0
        %1534 = vmatpush1.bf16.msra.mxu0 0
        %1535 = vmatprep.subr.bf16.mxu0 0
        %1536 = vmatpush1.bf16.msra.mxu0 0
        %1537 = vmatprep.subr.bf16.mxu0 0
        %1538 = vmatpush1.bf16.msra.mxu0 0
        %1539 = vmatprep.subr.bf16.mxu0 0
        %1540 = vmatpush1.bf16.msra.mxu0 0
        %1541 = vmatprep.subr.bf16.mxu0 0
        %1542 = vmatpush1.bf16.msra.mxu0 0
        %1543 = vmatprep.subr.bf16.mxu0 0
        %1544 = vmatpush1.bf16.msra.mxu0 0
        %1545 = vmatprep.subr.bf16.mxu0 0
        %1546 = vmatpush1.bf16.msra.mxu0 0
        %1547 = vmatprep.subr.bf16.mxu0 0
        %1548 = vmatpush1.bf16.msra.mxu0 0
        %1549 = vmatprep.subr.bf16.mxu0 0
        %1550 = vmatpush1.bf16.msra.mxu0 0
        %1551 = vmatprep.subr.bf16.mxu0 0
        %1552 = vmatpush1.bf16.msra.mxu0 0
        %1553 = vmatprep.mubr.bf16.mxu0 0
        %1554 = vmatmul.mubr.bf16.gmra.mrb[0].mxu0 %v1516
        %v1555 = vpop.f32.mrb[0].mxu0
        %v1556 = vadd.f32 0.0, %v1555
        %v1557 = vpop.f32.mrb[0].mxu0
        %v1558 = vpop.f32.mrb[0].mxu0
        %v1559 = vpop.f32.mrb[0].mxu0
        %1560 = vdwg.mxu0
        %1561 = vxpose.xlu0.c.b16.start [1/8] %v1431, 128
        %1562 = vxpose.xlu0.c.b16.cont [2/8] 0, 128
        %1563 = vxpose.xlu0.c.b16.cont [3/8] 0, 128
        %1564 = vxpose.xlu0.c.b16.cont [4/8] 0, 128
        %1565 = vxpose.xlu0.c.b16.cont [5/8] 0, 128
        %1566 = vxpose.xlu0.c.b16.cont [6/8] 0, 128
        %1567 = vxpose.xlu0.c.b16.cont [7/8] 0, 128
        %1568 = vxpose.xlu0.c.b16.end [8/8] 0, 128
        %v1569 = vpop.trf.xlu0
        %v1570 = vpop.trf.xlu0
        %v1571 = vpop.trf.xlu0
        %v1572 = vpop.trf.xlu0
        %v1573 = vpop.trf.xlu0
        %v1574 = vpop.trf.xlu0
        %v1575 = vpop.trf.xlu0
        %v1576 = vpop.trf.xlu0
        %v1578 = vsel %vm698, %v1569, 0
        %v1581 = vsel %vm702, %v1435, 0
        %1583 = vmatprep.subr.bf16.mxu0 0
        %1584 = vmatpush1.bf16.msra.mxu0 %v1581
        %1585 = vmatprep.subr.bf16.mxu0 0
        %1586 = vmatpush1.bf16.msra.mxu0 0
        %1587 = vmatprep.subr.bf16.mxu0 0
        %1588 = vmatpush1.bf16.msra.mxu0 0
        %1589 = vmatprep.subr.bf16.mxu0 0
        %1590 = vmatpush1.bf16.msra.mxu0 0
        %1591 = vmatprep.subr.bf16.mxu0 0
        %1592 = vmatpush1.bf16.msra.mxu0 0
        %1593 = vmatprep.subr.bf16.mxu0 0
        %1594 = vmatpush1.bf16.msra.mxu0 0
        %1595 = vmatprep.subr.bf16.mxu0 0
        %1596 = vmatpush1.bf16.msra.mxu0 0
        %1597 = vmatprep.subr.bf16.mxu0 0
        %1598 = vmatpush1.bf16.msra.mxu0 0
        %1599 = vmatprep.subr.bf16.mxu0 0
        %1600 = vmatpush1.bf16.msra.mxu0 0
        %1601 = vmatprep.subr.bf16.mxu0 0
        %1602 = vmatpush1.bf16.msra.mxu0 0
        %1603 = vmatprep.subr.bf16.mxu0 0
        %1604 = vmatpush1.bf16.msra.mxu0 0
        %1605 = vmatprep.subr.bf16.mxu0 0
        %1606 = vmatpush1.bf16.msra.mxu0 0
        %1607 = vmatprep.subr.bf16.mxu0 0
        %1608 = vmatpush1.bf16.msra.mxu0 0
        %1609 = vmatprep.subr.bf16.mxu0 0
        %1610 = vmatpush1.bf16.msra.mxu0 0
        %1611 = vmatprep.subr.bf16.mxu0 0
        %1612 = vmatpush1.bf16.msra.mxu0 0
        %1613 = vmatprep.subr.bf16.mxu0 0
        %1614 = vmatpush1.bf16.msra.mxu0 0
        %1615 = vmatprep.mubr.bf16.mxu0 0
        %1616 = vmatmul.mubr.bf16.gmra.mrb[0].mxu0 %v1578
        %v1617 = vpop.f32.mrb[0].mxu0
        %v1618 = vadd.f32 0.0, %v1617
        %v1619 = vpop.f32.mrb[0].mxu0
        %v1620 = vpop.f32.mrb[0].mxu0
        %v1621 = vpop.f32.mrb[0].mxu0
        %1622 = vdwg.mxu0
        %1623 = vxpose.xlu0.c.b16.start [1/8] %v1432, 128
        %1624 = vxpose.xlu0.c.b16.cont [2/8] 0, 128
        %1625 = vxpose.xlu0.c.b16.cont [3/8] 0, 128
        %1626 = vxpose.xlu0.c.b16.cont [4/8] 0, 128
        %1627 = vxpose.xlu0.c.b16.cont [5/8] 0, 128
        %1628 = vxpose.xlu0.c.b16.cont [6/8] 0, 128
        %1629 = vxpose.xlu0.c.b16.cont [7/8] 0, 128
        %1630 = vxpose.xlu0.c.b16.end [8/8] 0, 128
        %v1631 = vpop.trf.xlu0
        %v1632 = vpop.trf.xlu0
        %v1633 = vpop.trf.xlu0
        %v1634 = vpop.trf.xlu0
        %v1635 = vpop.trf.xlu0
        %v1636 = vpop.trf.xlu0
        %v1637 = vpop.trf.xlu0
        %v1638 = vpop.trf.xlu0
        %v1640 = vsel %vm698, %v1631, 0
        %v1643 = vsel %vm702, %v1436, 0
        %1645 = vmatprep.subr.bf16.mxu0 0
        %1646 = vmatpush1.bf16.msra.mxu0 %v1643
        %1647 = vmatprep.subr.bf16.mxu0 0
        %1648 = vmatpush1.bf16.msra.mxu0 0
        %1649 = vmatprep.subr.bf16.mxu0 0
        %1650 = vmatpush1.bf16.msra.mxu0 0
        %1651 = vmatprep.subr.bf16.mxu0 0
        %1652 = vmatpush1.bf16.msra.mxu0 0
        %1653 = vmatprep.subr.bf16.mxu0 0
        %1654 = vmatpush1.bf16.msra.mxu0 0
        %1655 = vmatprep.subr.bf16.mxu0 0
        %1656 = vmatpush1.bf16.msra.mxu0 0
        %1657 = vmatprep.subr.bf16.mxu0 0
        %1658 = vmatpush1.bf16.msra.mxu0 0
        %1659 = vmatprep.subr.bf16.mxu0 0
        %1660 = vmatpush1.bf16.msra.mxu0 0
        %1661 = vmatprep.subr.bf16.mxu0 0
        %1662 = vmatpush1.bf16.msra.mxu0 0
        %1663 = vmatprep.subr.bf16.mxu0 0
        %1664 = vmatpush1.bf16.msra.mxu0 0
        %1665 = vmatprep.subr.bf16.mxu0 0
        %1666 = vmatpush1.bf16.msra.mxu0 0
        %1667 = vmatprep.subr.bf16.mxu0 0
        %1668 = vmatpush1.bf16.msra.mxu0 0
        %1669 = vmatprep.subr.bf16.mxu0 0
        %1670 = vmatpush1.bf16.msra.mxu0 0
        %1671 = vmatprep.subr.bf16.mxu0 0
        %1672 = vmatpush1.bf16.msra.mxu0 0
        %1673 = vmatprep.subr.bf16.mxu0 0
        %1674 = vmatpush1.bf16.msra.mxu0 0
        %1675 = vmatprep.subr.bf16.mxu0 0
        %1676 = vmatpush1.bf16.msra.mxu0 0
        %1677 = vmatprep.mubr.bf16.mxu0 0
        %1678 = vmatmul.mubr.bf16.gmra.mrb[0].mxu0 %v1640
        %v1679 = vpop.f32.mrb[0].mxu0
        %v1680 = vadd.f32 0.0, %v1679
        %v1681 = vpop.f32.mrb[0].mxu0
        %v1682 = vpop.f32.mrb[0].mxu0
        %v1683 = vpop.f32.mrb[0].mxu0
        %1684 = vdwg.mxu0
        %v1685 = vmul.f32 %v1494, 0.35355338
        %v1686 = vmul.f32 %v1556, 0.35355338
        %v1687 = vmul.f32 %v1618, 0.35355338
        %v1688 = vmul.f32 %v1680, 0.35355338
        %v1689 = vsel %vm698, %v1685, -inf
        %1690 = vmax.xlane.f32.xlu0 %v1689
        %v1691 = vpop.xlane.xlu0 %1690
        %v1692 = vsel %vm698, %v1686, -inf
        %1693 = vmax.xlane.f32.xlu0 %v1692
        %v1694 = vpop.xlane.xlu0 %1693
        %v1695 = vsel %vm698, %v1687, -inf
        %1696 = vmax.xlane.f32.xlu0 %v1695
        %v1697 = vpop.xlane.xlu0 %1696
        %v1698 = vsel %vm698, %v1688, -inf
        %1699 = vmax.xlane.f32.xlu0 %v1698
        %v1700 = vpop.xlane.xlu0 %1699
        %v1701 = vsub.f32 %v1685, %v1691
        %v1702 = vsub.f32 %v1686, %v1694
        %v1703 = vsub.f32 %v1687, %v1697
        %v1704 = vsub.f32 %v1688, %v1700
        %v1705 = vmul.f32 %v1701, 1.442695
        %v1706 = vpow.pop %v1705
        %v1707 = vmul.f32 %v1702, 1.442695
        %v1708 = vpow.pop %v1707
        %v1709 = vmul.f32 %v1703, 1.442695
        %v1710 = vpow.pop %v1709
        %v1711 = vmul.f32 %v1704, 1.442695
        %v1712 = vpow.pop %v1711
        %v1713 = vsel %vm698, %v1706, 0.0
        %1714 = vadd.xlane.f32.xlu0 %v1713
        %v1715 = vpop.xlane.xlu0 %1714
        %v1716 = vsel %vm698, %v1708, 0.0
        %1717 = vadd.xlane.f32.xlu0 %v1716
        %v1718 = vpop.xlane.xlu0 %1717
        %v1719 = vsel %vm698, %v1710, 0.0
        %1720 = vadd.xlane.f32.xlu0 %v1719
        %v1721 = vpop.xlane.xlu0 %1720
        %v1722 = vsel %vm698, %v1712, 0.0
        %1723 = vadd.xlane.f32.xlu0 %v1722
        %v1724 = vpop.xlane.xlu0 %1723
        %v1725 = vrcp.pop %v1715
        %v1726 = vrcp.pop %v1718
        %v1727 = vrcp.pop %v1721
        %v1728 = vrcp.pop %v1724
        %v1729 = vmul.f32 %v1706, %v1725
        %v1730 = vmul.f32 %v1708, %v1726
        %v1731 = vmul.f32 %v1710, %v1727
        %v1732 = vmul.f32 %v1712, %v1728
        %v1733 = vpack.c.bf16 %v1415, %v1415
        %v1734 = vpack.c.bf16 %v1418, %v1418
        %v1735 = vpack.c.bf16 %v1423, %v1423
        %v1736 = vpack.c.bf16 %v1426, %v1426
        %v1737 = vpack.c.bf16 %v1729, %v1729
        %v1738 = vpack.c.bf16 %v1730, %v1730
        %v1739 = vpack.c.bf16 %v1731, %v1731
        %v1740 = vpack.c.bf16 %v1732, %v1732
        %v1742 = vsel %vm698, %v1733, 0
        %v1745 = vsel %vm698, %v1737, 0
        %1747 = vmatprep.subr.bf16.mxu0 0
        %1748 = vmatpush1.bf16.xpose.msra.mxu0 %v1745
        %1749 = vmatprep.subr.bf16.mxu0 0
        %1750 = vmatpush1.bf16.xpose.msra.mxu0 0
        %1751 = vmatprep.subr.bf16.mxu0 0
        %1752 = vmatpush1.bf16.xpose.msra.mxu0 0
        %1753 = vmatprep.subr.bf16.mxu0 0
        %1754 = vmatpush1.bf16.xpose.msra.mxu0 0
        %1755 = vmatprep.subr.bf16.mxu0 0
        %1756 = vmatpush1.bf16.xpose.msra.mxu0 0
        %1757 = vmatprep.subr.bf16.mxu0 0
        %1758 = vmatpush1.bf16.xpose.msra.mxu0 0
        %1759 = vmatprep.subr.bf16.mxu0 0
        %1760 = vmatpush1.bf16.xpose.msra.mxu0 0
        %1761 = vmatprep.subr.bf16.mxu0 0
        %1762 = vmatpush1.bf16.xpose.msra.mxu0 0
        %1763 = vmatprep.subr.bf16.mxu0 0
        %1764 = vmatpush1.bf16.xpose.msra.mxu0 0
        %1765 = vmatprep.subr.bf16.mxu0 0
        %1766 = vmatpush1.bf16.xpose.msra.mxu0 0
        %1767 = vmatprep.subr.bf16.mxu0 0
        %1768 = vmatpush1.bf16.xpose.msra.mxu0 0
        %1769 = vmatprep.subr.bf16.mxu0 0
        %1770 = vmatpush1.bf16.xpose.msra.mxu0 0
        %1771 = vmatprep.subr.bf16.mxu0 0
        %1772 = vmatpush1.bf16.xpose.msra.mxu0 0
        %1773 = vmatprep.subr.bf16.mxu0 0
        %1774 = vmatpush1.bf16.xpose.msra.mxu0 0
        %1775 = vmatprep.subr.bf16.mxu0 0
        %1776 = vmatpush1.bf16.xpose.msra.mxu0 0
        %1777 = vmatprep.subr.bf16.mxu0 0
        %1778 = vmatpush1.bf16.xpose.msra.mxu0 0
        %1779 = vmatprep.mubr.bf16.mxu0 0
        %1780 = vmatmul.mubr.bf16.gmra.mrb[0].mxu0 %v1742
        %v1781 = vpop.f32.mrb[0].mxu0
        %v1782 = vadd.f32 0.0, %v1781
        %v1783 = vpop.f32.mrb[0].mxu0
        %v1784 = vpop.f32.mrb[0].mxu0
        %v1785 = vpop.f32.mrb[0].mxu0
        %1786 = vdwg.mxu0
        %v1788 = vsel %vm698, %v1734, 0
        %v1791 = vsel %vm698, %v1738, 0
        %1793 = vmatprep.subr.bf16.mxu0 0
        %1794 = vmatpush1.bf16.xpose.msra.mxu0 %v1791
        %1795 = vmatprep.subr.bf16.mxu0 0
        %1796 = vmatpush1.bf16.xpose.msra.mxu0 0
        %1797 = vmatprep.subr.bf16.mxu0 0
        %1798 = vmatpush1.bf16.xpose.msra.mxu0 0
        %1799 = vmatprep.subr.bf16.mxu0 0
        %1800 = vmatpush1.bf16.xpose.msra.mxu0 0
        %1801 = vmatprep.subr.bf16.mxu0 0
        %1802 = vmatpush1.bf16.xpose.msra.mxu0 0
        %1803 = vmatprep.subr.bf16.mxu0 0
        %1804 = vmatpush1.bf16.xpose.msra.mxu0 0
        %1805 = vmatprep.subr.bf16.mxu0 0
        %1806 = vmatpush1.bf16.xpose.msra.mxu0 0
        %1807 = vmatprep.subr.bf16.mxu0 0
        %1808 = vmatpush1.bf16.xpose.msra.mxu0 0
        %1809 = vmatprep.subr.bf16.mxu0 0
        %1810 = vmatpush1.bf16.xpose.msra.mxu0 0
        %1811 = vmatprep.subr.bf16.mxu0 0
        %1812 = vmatpush1.bf16.xpose.msra.mxu0 0
        %1813 = vmatprep.subr.bf16.mxu0 0
        %1814 = vmatpush1.bf16.xpose.msra.mxu0 0
        %1815 = vmatprep.subr.bf16.mxu0 0
        %1816 = vmatpush1.bf16.xpose.msra.mxu0 0
        %1817 = vmatprep.subr.bf16.mxu0 0
        %1818 = vmatpush1.bf16.xpose.msra.mxu0 0
        %1819 = vmatprep.subr.bf16.mxu0 0
        %1820 = vmatpush1.bf16.xpose.msra.mxu0 0
        %1821 = vmatprep.subr.bf16.mxu0 0
        %1822 = vmatpush1.bf16.xpose.msra.mxu0 0
        %1823 = vmatprep.subr.bf16.mxu0 0
        %1824 = vmatpush1.bf16.xpose.msra.mxu0 0
        %1825 = vmatprep.mubr.bf16.mxu0 0
        %1826 = vmatmul.mubr.bf16.gmra.mrb[0].mxu0 %v1788
        %v1827 = vpop.f32.mrb[0].mxu0
        %v1828 = vadd.f32 0.0, %v1827
        %v1829 = vpop.f32.mrb[0].mxu0
        %v1830 = vpop.f32.mrb[0].mxu0
        %v1831 = vpop.f32.mrb[0].mxu0
        %1832 = vdwg.mxu0
        %v1834 = vsel %vm698, %v1735, 0
        %v1837 = vsel %vm698, %v1739, 0
        %1839 = vmatprep.subr.bf16.mxu0 0
        %1840 = vmatpush1.bf16.xpose.msra.mxu0 %v1837
        %1841 = vmatprep.subr.bf16.mxu0 0
        %1842 = vmatpush1.bf16.xpose.msra.mxu0 0
        %1843 = vmatprep.subr.bf16.mxu0 0
        %1844 = vmatpush1.bf16.xpose.msra.mxu0 0
        %1845 = vmatprep.subr.bf16.mxu0 0
        %1846 = vmatpush1.bf16.xpose.msra.mxu0 0
        %1847 = vmatprep.subr.bf16.mxu0 0
        %1848 = vmatpush1.bf16.xpose.msra.mxu0 0
        %1849 = vmatprep.subr.bf16.mxu0 0
        %1850 = vmatpush1.bf16.xpose.msra.mxu0 0
        %1851 = vmatprep.subr.bf16.mxu0 0
        %1852 = vmatpush1.bf16.xpose.msra.mxu0 0
        %1853 = vmatprep.subr.bf16.mxu0 0
        %1854 = vmatpush1.bf16.xpose.msra.mxu0 0
        %1855 = vmatprep.subr.bf16.mxu0 0
        %1856 = vmatpush1.bf16.xpose.msra.mxu0 0
        %1857 = vmatprep.subr.bf16.mxu0 0
        %1858 = vmatpush1.bf16.xpose.msra.mxu0 0
        %1859 = vmatprep.subr.bf16.mxu0 0
        %1860 = vmatpush1.bf16.xpose.msra.mxu0 0
        %1861 = vmatprep.subr.bf16.mxu0 0
        %1862 = vmatpush1.bf16.xpose.msra.mxu0 0
        %1863 = vmatprep.subr.bf16.mxu0 0
        %1864 = vmatpush1.bf16.xpose.msra.mxu0 0
        %1865 = vmatprep.subr.bf16.mxu0 0
        %1866 = vmatpush1.bf16.xpose.msra.mxu0 0
        %1867 = vmatprep.subr.bf16.mxu0 0
        %1868 = vmatpush1.bf16.xpose.msra.mxu0 0
        %1869 = vmatprep.subr.bf16.mxu0 0
        %1870 = vmatpush1.bf16.xpose.msra.mxu0 0
        %1871 = vmatprep.mubr.bf16.mxu0 0
        %1872 = vmatmul.mubr.bf16.gmra.mrb[0].mxu0 %v1834
        %v1873 = vpop.f32.mrb[0].mxu0
        %v1874 = vadd.f32 0.0, %v1873
        %v1875 = vpop.f32.mrb[0].mxu0
        %v1876 = vpop.f32.mrb[0].mxu0
        %v1877 = vpop.f32.mrb[0].mxu0
        %1878 = vdwg.mxu0
        %v1880 = vsel %vm698, %v1736, 0
        %v1883 = vsel %vm698, %v1740, 0
        %1885 = vmatprep.subr.bf16.mxu0 0
        %1886 = vmatpush1.bf16.xpose.msra.mxu0 %v1883
        %1887 = vmatprep.subr.bf16.mxu0 0
        %1888 = vmatpush1.bf16.xpose.msra.mxu0 0
        %1889 = vmatprep.subr.bf16.mxu0 0
        %1890 = vmatpush1.bf16.xpose.msra.mxu0 0
        %1891 = vmatprep.subr.bf16.mxu0 0
        %1892 = vmatpush1.bf16.xpose.msra.mxu0 0
        %1893 = vmatprep.subr.bf16.mxu0 0
        %1894 = vmatpush1.bf16.xpose.msra.mxu0 0
        %1895 = vmatprep.subr.bf16.mxu0 0
        %1896 = vmatpush1.bf16.xpose.msra.mxu0 0
        %1897 = vmatprep.subr.bf16.mxu0 0
        %1898 = vmatpush1.bf16.xpose.msra.mxu0 0
        %1899 = vmatprep.subr.bf16.mxu0 0
        %1900 = vmatpush1.bf16.xpose.msra.mxu0 0
        %1901 = vmatprep.subr.bf16.mxu0 0
        %1902 = vmatpush1.bf16.xpose.msra.mxu0 0
        %1903 = vmatprep.subr.bf16.mxu0 0
        %1904 = vmatpush1.bf16.xpose.msra.mxu0 0
        %1905 = vmatprep.subr.bf16.mxu0 0
        %1906 = vmatpush1.bf16.xpose.msra.mxu0 0
        %1907 = vmatprep.subr.bf16.mxu0 0
        %1908 = vmatpush1.bf16.xpose.msra.mxu0 0
        %1909 = vmatprep.subr.bf16.mxu0 0
        %1910 = vmatpush1.bf16.xpose.msra.mxu0 0
        %1911 = vmatprep.subr.bf16.mxu0 0
        %1912 = vmatpush1.bf16.xpose.msra.mxu0 0
        %1913 = vmatprep.subr.bf16.mxu0 0
        %1914 = vmatpush1.bf16.xpose.msra.mxu0 0
        %1915 = vmatprep.subr.bf16.mxu0 0
        %1916 = vmatpush1.bf16.xpose.msra.mxu0 0
        %1917 = vmatprep.mubr.bf16.mxu0 0
        %1918 = vmatmul.mubr.bf16.gmra.mrb[0].mxu0 %v1880
        %v1919 = vpop.f32.mrb[0].mxu0
        %v1920 = vadd.f32 0.0, %v1919
        %v1921 = vpop.f32.mrb[0].mxu0
        %v1922 = vpop.f32.mrb[0].mxu0
        %v1923 = vpop.f32.mrb[0].mxu0
        %1924 = vdwg.mxu0
        %v1925 = vpack.c.bf16 %v1828, %v1782
        %v1926 = vpack.c.bf16 %v1920, %v1874
        %1927 = vxpose.xlu0.c.b16.start [1/8] %v1925, 128
        %1928 = vxpose.xlu0.c.b16.cont [2/8] %v1926, 128
        %1929 = vxpose.xlu0.c.b16.cont [3/8] 0, 128
        %1930 = vxpose.xlu0.c.b16.cont [4/8] 0, 128
        %1931 = vxpose.xlu0.c.b16.cont [5/8] 0, 128
        %1932 = vxpose.xlu0.c.b16.cont [6/8] 0, 128
        %1933 = vxpose.xlu0.c.b16.cont [7/8] 0, 128
        %1934 = vxpose.xlu0.c.b16.end [8/8] 0, 128
        %v1935 = vpop.trf.xlu0
        %v1936 = vpop.trf.xlu0
        %v1937 = vpop.trf.xlu0
        %v1938 = vpop.trf.xlu0
        %v1939 = vpop.trf.xlu0
        %v1940 = vpop.trf.xlu0
        %v1941 = vpop.trf.xlu0
        %v1942 = vpop.trf.xlu0
        %v1944 = vsel %vm409, %v1935, 0
        %1946 = vmatprep.subr.bf16.mxu0 0
        %1947 = vmatpush1.bf16.msra.mxu0 %v1202
        %1948 = vmatprep.subr.bf16.mxu0 0
        %1949 = vmatpush1.bf16.msra.mxu0 %v1203
        %1950 = vmatprep.subr.bf16.mxu0 0
        %1951 = vmatpush1.bf16.msra.mxu0 0
        %1952 = vmatprep.subr.bf16.mxu0 0
        %1953 = vmatpush1.bf16.msra.mxu0 0
        %1954 = vmatprep.subr.bf16.mxu0 0
        %1955 = vmatpush1.bf16.msra.mxu0 0
        %1956 = vmatprep.subr.bf16.mxu0 0
        %1957 = vmatpush1.bf16.msra.mxu0 0
        %1958 = vmatprep.subr.bf16.mxu0 0
        %1959 = vmatpush1.bf16.msra.mxu0 0
        %1960 = vmatprep.subr.bf16.mxu0 0
        %1961 = vmatpush1.bf16.msra.mxu0 0
        %1962 = vmatprep.subr.bf16.mxu0 0
        %1963 = vmatpush1.bf16.msra.mxu0 0
        %1964 = vmatprep.subr.bf16.mxu0 0
        %1965 = vmatpush1.bf16.msra.mxu0 0
        %1966 = vmatprep.subr.bf16.mxu0 0
        %1967 = vmatpush1.bf16.msra.mxu0 0
        %1968 = vmatprep.subr.bf16.mxu0 0
        %1969 = vmatpush1.bf16.msra.mxu0 0
        %1970 = vmatprep.subr.bf16.mxu0 0
        %1971 = vmatpush1.bf16.msra.mxu0 0
        %1972 = vmatprep.subr.bf16.mxu0 0
        %1973 = vmatpush1.bf16.msra.mxu0 0
        %1974 = vmatprep.subr.bf16.mxu0 0
        %1975 = vmatpush1.bf16.msra.mxu0 0
        %1976 = vmatprep.subr.bf16.mxu0 0
        %1977 = vmatpush1.bf16.msra.mxu0 0
        %1978 = vmatprep.mubr.bf16.mxu0 0
        %1979 = vmatmul.mubr.bf16.gmra.mrb[0].mxu0 %v1944
        %v1980 = vpop.f32.mrb[0].mxu0
        %v1981 = vadd.f32 %v1177, %v1980
        %v1982 = vpop.f32.mrb[0].mxu0
        %v1983 = vpop.f32.mrb[0].mxu0
        %v1984 = vpop.f32.mrb[0].mxu0
        %1985 = vdwg.mxu0
        %v1986 = vadd.f32 %v1981, %v1273
        %v1987 = vsel %vm409, %v1986, 0.0
        %1988 = vadd.xlane.f32.xlu0 %v1987
        %v1989 = vpop.xlane.xlu0 %1988
        %v1990 = vmul.f32 %v1989, %v1253
        %v1991 = vsub.f32 %v1986, %v1990
        %v1992 = vmul.f32 %v1991, %v1991
        %v1993 = vsel %vm409, %v1992, 0.0
        %1994 = vadd.xlane.f32.xlu0 %v1993
        %v1995 = vpop.xlane.xlu0 %1994
        %v1996 = vmul.f32 %v1995, %v1253
        %v1997 = vadd.f32 %v1996, 1e-06
        %v1998 = vrsqrt.pop %v1997
        %v1999 = vmul.f32 %v1991, %v1998
        %v2000 = vmul.f32 %v1999, %v1267
        %v2001 = vadd.f32 %v2000, %v1272
        %v2002 = vpack.c.bf16 %v2001, %v2001
        %v2003 = vld [vmem:[%s5] sm:$0xf]
        %v2004 = vld [vmem:[%s5 + $0x4] sm:$0xf]
        %v2005 = vld [vmem:[%s5 + $0x8] sm:$0xf]
        %v2006 = vld [vmem:[%s5 + $0xc] sm:$0xf]
        %v2007 = vld [vmem:[%s6] sm:$0x1]
        %v2009 = vlaneseq
        %v2010 = vshrl.u32 %v2009, 7
        %v2011 = vsub.s32 0, %v2010
        %v2012 = vrot.slane %v2007, %v2011
        %v2018 = vunpack.c.l.b16 %v2003
        %v2019 = vunpack.c.l.b16 %v2004
        %v2020 = vunpack.c.l.b16 %v2005
        %v2021 = vunpack.c.l.b16 %v2006
        %v2022 = vpack.c.b16 %v2019, %v2018
        %v2023 = vpack.c.b16 %v2021, %v2020
        %v2027 = vsel %vm409, %v2002, 0
        %2029 = vmatprep.subr.bf16.mxu0 0
        %2030 = vmatpush1.bf16.msra.mxu0 %v2022
        %2031 = vmatprep.subr.bf16.mxu0 0
        %2032 = vmatpush1.bf16.msra.mxu0 %v2023
        %2033 = vmatprep.subr.bf16.mxu0 0
        %2034 = vmatpush1.bf16.msra.mxu0 0
        %2035 = vmatprep.subr.bf16.mxu0 0
        %2036 = vmatpush1.bf16.msra.mxu0 0
        %2037 = vmatprep.subr.bf16.mxu0 0
        %2038 = vmatpush1.bf16.msra.mxu0 0
        %2039 = vmatprep.subr.bf16.mxu0 0
        %2040 = vmatpush1.bf16.msra.mxu0 0
        %2041 = vmatprep.subr.bf16.mxu0 0
        %2042 = vmatpush1.bf16.msra.mxu0 0
        %2043 = vmatprep.subr.bf16.mxu0 0
        %2044 = vmatpush1.bf16.msra.mxu0 0
        %2045 = vmatprep.subr.bf16.mxu0 0
        %2046 = vmatpush1.bf16.msra.mxu0 0
        %2047 = vmatprep.subr.bf16.mxu0 0
        %2048 = vmatpush1.bf16.msra.mxu0 0
        %2049 = vmatprep.subr.bf16.mxu0 0
        %2050 = vmatpush1.bf16.msra.mxu0 0
        %2051 = vmatprep.subr.bf16.mxu0 0
        %2052 = vmatpush1.bf16.msra.mxu0 0
        %2053 = vmatprep.subr.bf16.mxu0 0
        %2054 = vmatpush1.bf16.msra.mxu0 0
        %2055 = vmatprep.subr.bf16.mxu0 0
        %2056 = vmatpush1.bf16.msra.mxu0 0
        %2057 = vmatprep.subr.bf16.mxu0 0
        %2058 = vmatpush1.bf16.msra.mxu0 0
        %2059 = vmatprep.subr.bf16.mxu0 0
        %2060 = vmatpush1.bf16.msra.mxu0 0
        %2061 = vmatprep.mubr.bf16.mxu0 0
        %2062 = vmatmul.mubr.bf16.gmra.mrb[0].mxu0 %v2027
        %v2063 = vpop.f32.mrb[0].mxu0
        %v2064 = vadd.f32 %v2012, %v2063
        %v2065 = vpop.f32.mrb[0].mxu0
        %v2066 = vpop.f32.mrb[0].mxu0
        %v2067 = vpop.f32.mrb[0].mxu0
        %2068 = vdwg.mxu0
        %v2069 = vmax.f32 %v2064, 0.0
        %v2070 = vpack.c.bf16 %v2069, %v2069
        %v2071 = vld [vmem:[%s7] sm:$0xf]
        %v2072 = vld [vmem:[%s7 + $0x4] sm:$0xf]
        %v2073 = vld [vmem:[%s7 + $0x8] sm:$0xf]
        %v2074 = vld [vmem:[%s7 + $0xc] sm:$0xf]
        %v2075 = vld [vmem:[%s7 + $0x10] sm:$0xf]
        %v2076 = vld [vmem:[%s7 + $0x14] sm:$0xf]
        %v2077 = vld [vmem:[%s7 + $0x18] sm:$0xf]
        %v2078 = vld [vmem:[%s7 + $0x1c] sm:$0xf]
        %v2079 = vlaneseq
        %v2080 = vshrl.u32 %v2079, 7
        %v2081 = vsub.s32 0, %v2080
        %v2082 = vrot.slane %v357, %v2081
        %v2091 = vunpack.c.l.b16 %v2071
        %v2092 = vunpack.c.l.b16 %v2072
        %v2093 = vunpack.c.l.b16 %v2073
        %v2094 = vunpack.c.l.b16 %v2074
        %v2095 = vunpack.c.l.b16 %v2075
        %v2096 = vunpack.c.l.b16 %v2076
        %v2097 = vunpack.c.l.b16 %v2077
        %v2098 = vunpack.c.l.b16 %v2078
        %v2099 = vpack.c.b16 %v2092, %v2091
        %v2100 = vpack.c.b16 %v2094, %v2093
        %v2101 = vpack.c.b16 %v2096, %v2095
        %v2102 = vpack.c.b16 %v2098, %v2097
        %vm2107 = vcmask 523264
        %v2109 = vsel %vm2107, %v2070, 0
        %2111 = vmatprep.subr.bf16.mxu0 0
        %2112 = vmatpush1.bf16.msra.mxu0 %v2099
        %2113 = vmatprep.subr.bf16.mxu0 0
        %2114 = vmatpush1.bf16.msra.mxu0 %v2100
        %2115 = vmatprep.subr.bf16.mxu0 0
        %2116 = vmatpush1.bf16.msra.mxu0 %v2101
        %2117 = vmatprep.subr.bf16.mxu0 0
        %2118 = vmatpush1.bf16.msra.mxu0 %v2102
        %2119 = vmatprep.subr.bf16.mxu0 0
        %2120 = vmatpush1.bf16.msra.mxu0 0
        %2121 = vmatprep.subr.bf16.mxu0 0
        %2122 = vmatpush1.bf16.msra.mxu0 0
        %2123 = vmatprep.subr.bf16.mxu0 0
        %2124 = vmatpush1.bf16.msra.mxu0 0
        %2125 = vmatprep.subr.bf16.mxu0 0
        %2126 = vmatpush1.bf16.msra.mxu0 0
        %2127 = vmatprep.subr.bf16.mxu0 0
        %2128 = vmatpush1.bf16.msra.mxu0 0
        %2129 = vmatprep.subr.bf16.mxu0 0
        %2130 = vmatpush1.bf16.msra.mxu0 0
        %2131 = vmatprep.subr.bf16.mxu0 0
        %2132 = vmatpush1.bf16.msra.mxu0 0
        %2133 = vmatprep.subr.bf16.mxu0 0
        %2134 = vmatpush1.bf16.msra.mxu0 0
        %2135 = vmatprep.subr.bf16.mxu0 0
        %2136 = vmatpush1.bf16.msra.mxu0 0
        %2137 = vmatprep.subr.bf16.mxu0 0
        %2138 = vmatpush1.bf16.msra.mxu0 0
        %2139 = vmatprep.subr.bf16.mxu0 0
        %2140 = vmatpush1.bf16.msra.mxu0 0
        %2141 = vmatprep.subr.bf16.mxu0 0
        %2142 = vmatpush1.bf16.msra.mxu0 0
        %2143 = vmatprep.mubr.bf16.mxu0 0
        %2144 = vmatmul.mubr.bf16.gmra.mrb[0].mxu0 %v2109
        %v2145 = vpop.f32.mrb[0].mxu0
        %v2146 = vadd.f32 %v2082, %v2145
        %v2147 = vpop.f32.mrb[0].mxu0
        %v2148 = vpop.f32.mrb[0].mxu0
        %v2149 = vpop.f32.mrb[0].mxu0
        %2150 = vdwg.mxu0
        %v2151 = vadd.f32 %v2146, %v2001
        %v2152 = vsel %vm409, %v2151, 0.0
        %2153 = vadd.xlane.f32.xlu0 %v2152
        %v2154 = vpop.xlane.xlu0 %2153
        %v2155 = vmul.f32 %v2154, %v1253
        %v2156 = vsub.f32 %v2151, %v2155
        %v2157 = vmul.f32 %v2156, %v2156
        %v2158 = vsel %vm409, %v2157, 0.0
        %2159 = vadd.xlane.f32.xlu0 %v2158
        %v2160 = vpop.xlane.xlu0 %2159
        %v2161 = vmul.f32 %v2160, %v1253
        %v2162 = vadd.f32 %v2161, 1e-06
        %v2163 = vrsqrt.pop %v2162
        %v2164 = vmul.f32 %v2156, %v2163
        %v2165 = vlaneseq
        %v2166 = vshrl.u32 %v2165, 7
        %v2167 = vsub.s32 0, %v2166
        %v2168 = vrot.slane %v358, %v2167
        %v2169 = vmul.f32 %v2164, %v2168
        %v2170 = vlaneseq
        %v2171 = vshrl.u32 %v2170, 7
        %v2172 = vsub.s32 0, %v2171
        %v2173 = vrot.slane %v359, %v2172
        %v2174 = vadd.f32 %v2169, %v2173
        %2175 = vst.msk [vmem:[%s309] sm:$0xff] %vm409, %v2174
        %s2176 = sand.u32 %s208, 1
        %s2177 = scalar_lea.sflag [#allocation3], %s2176
        %s2178 = sand.u32 %s208, 1
        %s2179 = smul.addr %s2178, 8
        %s2180 = scalar_lea.vmem [#allocation2], %s2179
        // Predicated region
        $region53: #{tpu_custom_call.1} parent=51 // pred_check
          %p2181 = pneg %p218
        $region54: #{tpu_custom_call.1} parent=51 // pred_check_branch
          %2183 = sbr.rel (%p2181) target = $region56
        $region55: #{tpu_custom_call.1} parent=51 // pred_region
          %s2185 = ssub.s32 128, 128
          %2186 = vsyncadd %s2177, %s2185
          %s2187 = smul.addr %s22, 128
          %s2188 = scalar_lea.hbm %s8, %s2187
          %s2190 = sshll.u32 %s2180, 4
          %s2191 = int_to_ptr.vmem [resolvable:$true] %s2190
          %2193 = dma.vmem_to_hbm [thread:$0]  %s2191, 128, %s2188, %s2177
        $region56: #{tpu_custom_call.1} parent=51 // pred_fallthru
          _
      $region52: #{tpu_custom_call.1} parent=5 // pred_fallthru
        _
      %p2194 = scmp.le.s32.totalorder 2, %s17
      // Predicated region
      $region57: #{tpu_custom_call.1} parent=5 // pred_check
        %p2195 = pneg %p2194
      $region58: #{tpu_custom_call.1} parent=5 // pred_check_branch
        %2197 = sbr.rel (%p2195) target = $region60
      $region59: #{tpu_custom_call.1} parent=5 // pred_region
        %s2198 = ssub.s32 %s17, 2
        // Predicated region
        $region61: #{tpu_custom_call.1} parent=59 // pred_check
          %p2199 = pneg %p224
        $region62: #{tpu_custom_call.1} parent=59 // pred_check_branch
          %2201 = sbr.rel (%p2199) target = $region64
        $region63: #{tpu_custom_call.1} parent=59 // pred_region
          %s2202 = sand.u32 %s209, 1
          %s2203 = scalar_lea.sflag [#allocation3], %s2202
          %s2204 = sand.u32 %s209, 1
          %s2205 = smul.addr %s2204, 8
          %s2206 = scalar_lea.vmem [#allocation2], %s2205
          %2207 = dma.done %s2203, 128
        $region64: #{tpu_custom_call.1} parent=59 // pred_fallthru
          _
      $region60: #{tpu_custom_call.1} parent=5 // pred_fallthru
        _
    $region6: #{tpu_custom_call.1} parent=1 // loop_footer
      %s21 = sadd.s32 1, %s17
    $region7: #{tpu_custom_call.1} parent=1 // loop_footer_branch
      %16 = sbr.rel target = $region3
    $region8: #{tpu_custom_call.1} parent=1 // loop_exit
      _
    %2208 = vsyncpa [#allocation3], 1
    %s2209 = scalar_lea.sflag [#allocation3], 1
    %2210 = vsyncpa %s2209, 1

</llo_original>
